<compile_context>
chip_gen: v7x
topology: tpu7x:2x2x1
jax: 0.10.0
libtpu: 0.0.40
codegen_flags: <defaults>
</compile_context>

<pallas_src>
import functools

import jax
import jax.numpy as jnp
from jax.experimental import pallas as pl
from jax.experimental.pallas import tpu as pltpu

KH = KW = 3
STRIDE = 2
PAD = 1
LANE = 128


def _downsample_kernel(x_ref, xh_ref, w_ref, b_ref, o_ref, halo_ref, sem,
                       *, TH, Wo, Cin, Cout_pad):
    # x_ref    : (4, TH, Wph, Cin)      polyphase input block (auto-pipelined)
    # xh_ref   : (B, 4, Hph, Wph, Cin)  full polyphase input, left in HBM
    # w_ref    : (9, Cin, Cout_pad)     per-tap weight, lane-dense Cout
    # b_ref    : (1, Cout_pad)
    # o_ref    : (TH, Wo, Cout_pad)     lane-dense output block
    # halo_ref : VMEM (2, 1, Wph, Cin)  even-row phases of phase-row (r+1)*TH
    # sem      : DMA semaphore
    b = pl.program_id(0)
    r = pl.program_id(1)
    hr = (r + 1) * TH

    # Kick off the 1-phase-row halo fetch (only feeds the kh=2 taps); it
    # overlaps with the first six tap matmuls below.
    halo_cp = pltpu.make_async_copy(
        xh_ref.at[b, pl.ds(0, 2), pl.ds(hr, 1)], halo_ref, sem)
    halo_cp.start()

    M = TH * Wo
    acc = jnp.zeros((M, Cout_pad), jnp.float32)

    # kh = 0, 1: both tap rows live inside the current TH-row polyphase block.
    for kh in range(2):
        for kw in range(KW):
            phase = 2 * (kh % 2) + (kw % 2)
            c0 = kw // 2
            tap = x_ref[phase, 0:TH, c0:c0 + Wo, :].reshape(M, Cin)
            acc = acc + jnp.dot(tap, w_ref[kh * KW + kw],
                                preferred_element_type=jnp.float32)

    halo_cp.wait()

    # kh = 2: rows 1..TH-1 of the block plus the fetched halo phase-row.
    for kw in range(KW):
        phase = kw % 2                      # row-parity 0 -> phases 0 / 1
        c0 = kw // 2
        halo_row = halo_ref[phase, :, c0:c0 + Wo, :]              # (1, Wo, Cin)
        if TH > 1:
            main_rows = x_ref[phase, 1:TH, c0:c0 + Wo, :]         # (TH-1, Wo, Cin)
            tap = jnp.concatenate([main_rows, halo_row], axis=0)
        else:
            tap = halo_row
        acc = acc + jnp.dot(tap.reshape(M, Cin), w_ref[2 * KW + kw],
                            preferred_element_type=jnp.float32)

    acc = acc + b_ref[...].astype(jnp.float32)                    # (1, Cout_pad) bcast
    o_ref[...] = acc.reshape(TH, Wo, Cout_pad).astype(o_ref.dtype)


def _vmem_budget():
    """(vmem_limit_bytes, working-set budget) derived from the chip's VMEM."""
    try:
        cap = int(pltpu.get_tpu_info().vmem_capacity_bytes)
    except Exception:                       # non-TPU host / older API: be v7x-safe
        cap = 64 * 1024 * 1024
    limit = min(cap * 3 // 4, 96 * 1024 * 1024)   # ~96 MiB on v5e/v6e, ~48 MiB on v7x
    return limit, (limit * 3) // 5                # leave headroom for Mosaic internals


def _pick_row_tile(Ho, Wph, Wo, Cin, Cout_pad, itemsize, budget_bytes):
    """Largest TH (<= Ho) whose pipelined working set fits the VMEM budget."""
    def working_set(th):
        inp = 2 * 4 * th * Wph * Cin * itemsize            # double-buffered input block
        out = 2 * th * Wo * Cout_pad * itemsize            # double-buffered output block
        acc = th * Wo * Cout_pad * 4                       # live f32 accumulator
        taps = 2 * th * Wo * Cin * max(itemsize, 4)        # live tap temporaries
        wts = 2 * (KH * KW * Cin * Cout_pad + Cout_pad) * itemsize  # dbl-buffered w + b
        halo = 2 * Wph * Cin * itemsize
        return inp + out + acc + taps + wts + halo

    best = 1
    for th in range(1, Ho + 1):
        if working_set(th) <= budget_bytes:
            best = th
    # TODO(synk): if even working_set(1) exceeds the budget (huge Wo*Cin*Cout),
    #             additionally split the Wo dimension instead of relying on TH=1.
    return best


def downsample(x_nchw, weight, bias):
    """Conv2d(Cin, Cout, kernel_size=3, stride=2, padding=1) on NCHW input.

    weight: (Cout, Cin, 3, 3) torch layout, bias: (Cout,). Returns NCHW.
    """
    B, Cin, H, W = x_nchw.shape
    Cout = weight.shape[0]
    Ho = (H + 2 * PAD - KH) // STRIDE + 1
    Wo = (W + 2 * PAD - KW) // STRIDE + 1
    Wph = Wo + 1
    Cout_pad = ((Cout + LANE - 1) // LANE) * LANE

    dtype = x_nchw.dtype
    itemsize = jnp.dtype(dtype).itemsize
    vmem_limit, budget = _vmem_budget()
    TH = _pick_row_tile(Ho, Wph, Wo, Cin, Cout_pad, itemsize, budget)
    nT = -(-Ho // TH)                      # TH need not divide Ho
    Ho_pad = nT * TH
    Hph = Ho_pad + 1                       # +1 phase-row so the last halo row exists

    # ---- wrapper-side polyphase (space-to-depth) relayout ----
    x_nhwc = jnp.transpose(x_nchw, (0, 2, 3, 1))
    pad_h_hi = 2 * Hph - H - PAD           # zero-pad so padded height is exactly 2*Hph
    pad_w_hi = 2 * Wph - W - PAD
    x_pad = jnp.pad(x_nhwc, ((0, 0), (PAD, pad_h_hi), (PAD, pad_w_hi), (0, 0)))
    # phase index = 2*(row parity) + (col parity)
    x_ph = (x_pad.reshape(B, Hph, 2, Wph, 2, Cin)
                 .transpose(0, 2, 4, 1, 3, 5)
                 .reshape(B, 4, Hph, Wph, Cin))

    # Per-tap weights, lane-dense (zero-padded) Cout.
    w_taps = jnp.transpose(weight, (2, 3, 1, 0)).reshape(KH * KW, Cin, Cout)
    w_taps = jnp.pad(w_taps, ((0, 0), (0, 0), (0, Cout_pad - Cout))).astype(dtype)
    b_pad = jnp.pad(bias, (0, Cout_pad - Cout)).reshape(1, Cout_pad).astype(dtype)

    kernel = functools.partial(_downsample_kernel,
                               TH=TH, Wo=Wo, Cin=Cin, Cout_pad=Cout_pad)

    out = pl.pallas_call(
        kernel,
        out_shape=jax.ShapeDtypeStruct((B, Ho_pad, Wo, Cout_pad), dtype),
        grid_spec=pltpu.PrefetchScalarGridSpec(
            num_scalar_prefetch=0,
            grid=(B, nT),
            in_specs=[
                pl.BlockSpec((None, 4, TH, Wph, Cin), lambda b, r: (b, 0, r, 0, 0)),
                pl.BlockSpec(memory_space=pl.ANY),     # same array; halo DMA source
                pl.BlockSpec((KH * KW, Cin, Cout_pad), lambda b, r: (0, 0, 0)),
                pl.BlockSpec((1, Cout_pad), lambda b, r: (0, 0)),
            ],
            out_specs=pl.BlockSpec((None, TH, Wo, Cout_pad), lambda b, r: (b, r, 0, 0)),
            scratch_shapes=[
                pltpu.VMEM((2, 1, Wph, Cin), dtype),   # halo phase-row buffer
                pltpu.SemaphoreType.DMA,
            ],
        ),
        compiler_params=pltpu.CompilerParams(
            dimension_semantics=("parallel", "parallel"),
            vmem_limit_bytes=vmem_limit,
        ),
    )(x_ph, x_ph, w_taps, b_pad)

    out = out[:, :Ho, :, :Cout]            # drop row padding + lane padding
    return jnp.transpose(out, (0, 3, 1, 2))  # back to NCHW


if __name__ == "__main__":
    B, Cin, Cout, H, W = 2, 4, 8, 16, 16

    key = jax.random.PRNGKey(0)
    kx, kw_, kb = jax.random.split(key, 3)

    x = jax.random.normal(kx, (B, Cin, H, W), dtype=jnp.float32)
    # torch-Conv2d-like init: U(-k, k), k = 1/sqrt(Cin*KH*KW)
    fan_in = Cin * KH * KW
    limit = 1.0 / (fan_in ** 0.5)
    weight = jax.random.uniform(
        kw_, (Cout, Cin, KH, KW), minval=-limit, maxval=limit, dtype=jnp.float32)
    bias = jax.random.uniform(
        kb, (Cout,), minval=-limit, maxval=limit, dtype=jnp.float32)

    out = jax.jit(downsample)(x, weight, bias)
    out = jax.block_until_ready(out)

    # Reference: XLA conv (NCHW / OIHW, stride 2, pad 1).
    ref = jax.lax.conv_general_dilated(
        x, weight, window_strides=(STRIDE, STRIDE),
        padding=((PAD, PAD), (PAD, PAD)),
        dimension_numbers=("NCHW", "OIHW", "NCHW"),
    ) + bias.reshape(1, Cout, 1, 1)

    assert out.shape == (B, Cout, H // 2, W // 2), out.shape
    err = float(jnp.max(jnp.abs(out - ref)))
    assert err < 1e-4, err
    print("KERNEL_OK")
</pallas_src>

<mosaic_0001>
module attributes {stable_mosaic.version = 11 : i64} {
  func.func @_downsample_kernel(%arg0: i32, %arg1: i32, %arg2: memref<1x4x8x9x4xf32, #tpu.memory_space<vmem>>, %arg3: memref<2x4x9x9x4xf32, #tpu.memory_space<any>>, %arg4: memref<9x4x128xf32, #tpu.memory_space<vmem>>, %arg5: memref<1x128xf32, #tpu.memory_space<vmem>>, %arg6: memref<1x8x8x128xf32, #tpu.memory_space<vmem>>, %arg7: memref<2x1x9x4xf32, #tpu.memory_space<vmem>>, %arg8: memref<!tpu.dma_semaphore, #tpu.memory_space<semaphore_mem>>) attributes {dimension_semantics = [#tpu.dimension_semantics<parallel>, #tpu.dimension_semantics<parallel>], iteration_bounds = array<i64: 2, 1>, scalar_prefetch = 0 : i64, scratch_operands = 2 : i64, tpu.core_type = #tpu.core_type<tc>, window_params = [{transform_indices = @transform_0, window_bounds = array<i64: 1, 4, 8, 9, 4>}, {}, {pipeline_mode = #tpu.pipeline_mode<synchronous>, transform_indices = @transform_2, window_bounds = array<i64: 9, 4, 128>}, {pipeline_mode = #tpu.pipeline_mode<synchronous>, transform_indices = @transform_3, window_bounds = array<i64: 1, 128>}, {transform_indices = @transform_4, window_bounds = array<i64: 1, 8, 8, 128>}]} {
    %c1_i32 = arith.constant 1 : i32
    %0 = arith.addi %arg1, %c1_i32 : i32
    %c8_i32 = arith.constant 8 : i32
    %1 = arith.muli %0, %c8_i32 : i32
    %c0_i32 = arith.constant 0 : i32
    %c0_i32_0 = arith.constant 0 : i32
    %c0_i32_1 = arith.constant 0 : i32
    %2 = tpu.memref_slice %arg3[%arg0, %c0_i32, %1, %c0_i32_0, %c0_i32_1] : memref<2x4x9x9x4xf32, #tpu.memory_space<any>> -> memref<1x2x1x9x4xf32, #tpu.memory_space<any>>
    %3 = tpu.memref_squeeze %2 : memref<1x2x1x9x4xf32, #tpu.memory_space<any>> -> memref<2x1x9x4xf32, #tpu.memory_space<any>>
    tpu.enqueue_dma source(%3 : memref<2x1x9x4xf32, #tpu.memory_space<any>>) target(%arg7 : memref<2x1x9x4xf32, #tpu.memory_space<vmem>>) target_semaphore(%arg8 : memref<!tpu.dma_semaphore, #tpu.memory_space<semaphore_mem>>)
    %cst = arith.constant 0.000000e+00 : f32
    %4 = vector.broadcast %cst : f32 to vector<64x128xf32>
    %c0 = arith.constant 0 : index
    %c0_2 = arith.constant 0 : index
    %c0_3 = arith.constant 0 : index
    %c0_4 = arith.constant 0 : index
    %c0_5 = arith.constant 0 : index
    %5 = vector.load %arg2[%c0, %c0_2, %c0_3, %c0_4, %c0_5] : memref<1x4x8x9x4xf32, #tpu.memory_space<vmem>>, vector<1x1x8x8x4xf32>
    %6 = vector.shape_cast %5 : vector<1x1x8x8x4xf32> to vector<8x8x4xf32>
    %7 = vector.shape_cast %6 : vector<8x8x4xf32> to vector<64x4xf32>
    %c0_6 = arith.constant 0 : index
    %c0_7 = arith.constant 0 : index
    %c0_8 = arith.constant 0 : index
    %8 = vector.load %arg4[%c0_6, %c0_7, %c0_8] : memref<9x4x128xf32, #tpu.memory_space<vmem>>, vector<1x4x128xf32>
    %9 = vector.shape_cast %8 : vector<1x4x128xf32> to vector<4x128xf32>
    %cst_9 = arith.constant dense<0.000000e+00> : vector<64x128xf32>
    %10 = tpu.matmul %7, %9, %cst_9 {dimension_numbers = #tpu.dot_dimension_numbers<[1], [0], [0], [1], [0, 0, 1, 1], [], []>} : vector<64x4xf32>, vector<4x128xf32>, vector<64x128xf32> -> vector<64x128xf32>
    %11 = arith.addf %4, %10 : vector<64x128xf32>
    %c0_10 = arith.constant 0 : index
    %c1 = arith.constant 1 : index
    %c0_11 = arith.constant 0 : index
    %c0_12 = arith.constant 0 : index
    %c0_13 = arith.constant 0 : index
    %12 = vector.load %arg2[%c0_10, %c1, %c0_11, %c0_12, %c0_13] : memref<1x4x8x9x4xf32, #tpu.memory_space<vmem>>, vector<1x1x8x8x4xf32>
    %13 = vector.shape_cast %12 : vector<1x1x8x8x4xf32> to vector<8x8x4xf32>
    %14 = vector.shape_cast %13 : vector<8x8x4xf32> to vector<64x4xf32>
    %c1_14 = arith.constant 1 : index
    %c0_15 = arith.constant 0 : index
    %c0_16 = arith.constant 0 : index
    %15 = vector.load %arg4[%c1_14, %c0_15, %c0_16] : memref<9x4x128xf32, #tpu.memory_space<vmem>>, vector<1x4x128xf32>
    %16 = vector.shape_cast %15 : vector<1x4x128xf32> to vector<4x128xf32>
    %cst_17 = arith.constant dense<0.000000e+00> : vector<64x128xf32>
    %17 = tpu.matmul %14, %16, %cst_17 {dimension_numbers = #tpu.dot_dimension_numbers<[1], [0], [0], [1], [0, 0, 1, 1], [], []>} : vector<64x4xf32>, vector<4x128xf32>, vector<64x128xf32> -> vector<64x128xf32>
    %18 = arith.addf %11, %17 : vector<64x128xf32>
    %c0_18 = arith.constant 0 : index
    %c0_19 = arith.constant 0 : index
    %c0_20 = arith.constant 0 : index
    %c1_21 = arith.constant 1 : index
    %c0_22 = arith.constant 0 : index
    %19 = vector.load %arg2[%c0_18, %c0_19, %c0_20, %c1_21, %c0_22] : memref<1x4x8x9x4xf32, #tpu.memory_space<vmem>>, vector<1x1x8x8x4xf32>
    %20 = vector.shape_cast %19 : vector<1x1x8x8x4xf32> to vector<8x8x4xf32>
    %21 = vector.shape_cast %20 : vector<8x8x4xf32> to vector<64x4xf32>
    %c2 = arith.constant 2 : index
    %c0_23 = arith.constant 0 : index
    %c0_24 = arith.constant 0 : index
    %22 = vector.load %arg4[%c2, %c0_23, %c0_24] : memref<9x4x128xf32, #tpu.memory_space<vmem>>, vector<1x4x128xf32>
    %23 = vector.shape_cast %22 : vector<1x4x128xf32> to vector<4x128xf32>
    %cst_25 = arith.constant dense<0.000000e+00> : vector<64x128xf32>
    %24 = tpu.matmul %21, %23, %cst_25 {dimension_numbers = #tpu.dot_dimension_numbers<[1], [0], [0], [1], [0, 0, 1, 1], [], []>} : vector<64x4xf32>, vector<4x128xf32>, vector<64x128xf32> -> vector<64x128xf32>
    %25 = arith.addf %18, %24 : vector<64x128xf32>
    %c0_26 = arith.constant 0 : index
    %c2_27 = arith.constant 2 : index
    %c0_28 = arith.constant 0 : index
    %c0_29 = arith.constant 0 : index
    %c0_30 = arith.constant 0 : index
    %26 = vector.load %arg2[%c0_26, %c2_27, %c0_28, %c0_29, %c0_30] : memref<1x4x8x9x4xf32, #tpu.memory_space<vmem>>, vector<1x1x8x8x4xf32>
    %27 = vector.shape_cast %26 : vector<1x1x8x8x4xf32> to vector<8x8x4xf32>
    %28 = vector.shape_cast %27 : vector<8x8x4xf32> to vector<64x4xf32>
    %c3 = arith.constant 3 : index
    %c0_31 = arith.constant 0 : index
    %c0_32 = arith.constant 0 : index
    %29 = vector.load %arg4[%c3, %c0_31, %c0_32] : memref<9x4x128xf32, #tpu.memory_space<vmem>>, vector<1x4x128xf32>
    %30 = vector.shape_cast %29 : vector<1x4x128xf32> to vector<4x128xf32>
    %cst_33 = arith.constant dense<0.000000e+00> : vector<64x128xf32>
    %31 = tpu.matmul %28, %30, %cst_33 {dimension_numbers = #tpu.dot_dimension_numbers<[1], [0], [0], [1], [0, 0, 1, 1], [], []>} : vector<64x4xf32>, vector<4x128xf32>, vector<64x128xf32> -> vector<64x128xf32>
    %32 = arith.addf %25, %31 : vector<64x128xf32>
    %c0_34 = arith.constant 0 : index
    %c3_35 = arith.constant 3 : index
    %c0_36 = arith.constant 0 : index
    %c0_37 = arith.constant 0 : index
    %c0_38 = arith.constant 0 : index
    %33 = vector.load %arg2[%c0_34, %c3_35, %c0_36, %c0_37, %c0_38] : memref<1x4x8x9x4xf32, #tpu.memory_space<vmem>>, vector<1x1x8x8x4xf32>
    %34 = vector.shape_cast %33 : vector<1x1x8x8x4xf32> to vector<8x8x4xf32>
    %35 = vector.shape_cast %34 : vector<8x8x4xf32> to vector<64x4xf32>
    %c4 = arith.constant 4 : index
    %c0_39 = arith.constant 0 : index
    %c0_40 = arith.constant 0 : index
    %36 = vector.load %arg4[%c4, %c0_39, %c0_40] : memref<9x4x128xf32, #tpu.memory_space<vmem>>, vector<1x4x128xf32>
    %37 = vector.shape_cast %36 : vector<1x4x128xf32> to vector<4x128xf32>
    %cst_41 = arith.constant dense<0.000000e+00> : vector<64x128xf32>
    %38 = tpu.matmul %35, %37, %cst_41 {dimension_numbers = #tpu.dot_dimension_numbers<[1], [0], [0], [1], [0, 0, 1, 1], [], []>} : vector<64x4xf32>, vector<4x128xf32>, vector<64x128xf32> -> vector<64x128xf32>
    %39 = arith.addf %32, %38 : vector<64x128xf32>
    %c0_42 = arith.constant 0 : index
    %c2_43 = arith.constant 2 : index
    %c0_44 = arith.constant 0 : index
    %c1_45 = arith.constant 1 : index
    %c0_46 = arith.constant 0 : index
    %40 = vector.load %arg2[%c0_42, %c2_43, %c0_44, %c1_45, %c0_46] : memref<1x4x8x9x4xf32, #tpu.memory_space<vmem>>, vector<1x1x8x8x4xf32>
    %41 = vector.shape_cast %40 : vector<1x1x8x8x4xf32> to vector<8x8x4xf32>
    %42 = vector.shape_cast %41 : vector<8x8x4xf32> to vector<64x4xf32>
    %c5 = arith.constant 5 : index
    %c0_47 = arith.constant 0 : index
    %c0_48 = arith.constant 0 : index
    %43 = vector.load %arg4[%c5, %c0_47, %c0_48] : memref<9x4x128xf32, #tpu.memory_space<vmem>>, vector<1x4x128xf32>
    %44 = vector.shape_cast %43 : vector<1x4x128xf32> to vector<4x128xf32>
    %cst_49 = arith.constant dense<0.000000e+00> : vector<64x128xf32>
    %45 = tpu.matmul %42, %44, %cst_49 {dimension_numbers = #tpu.dot_dimension_numbers<[1], [0], [0], [1], [0, 0, 1, 1], [], []>} : vector<64x4xf32>, vector<4x128xf32>, vector<64x128xf32> -> vector<64x128xf32>
    %46 = arith.addf %39, %45 : vector<64x128xf32>
    %c0_i32_50 = arith.constant 0 : i32
    %c0_i32_51 = arith.constant 0 : i32
    %c0_i32_52 = arith.constant 0 : i32
    %47 = tpu.memref_slice %arg3[%arg0, %c0_i32_50, %1, %c0_i32_51, %c0_i32_52] : memref<2x4x9x9x4xf32, #tpu.memory_space<any>> -> memref<1x2x1x9x4xf32, #tpu.memory_space<any>>
    %48 = tpu.memref_squeeze %47 : memref<1x2x1x9x4xf32, #tpu.memory_space<any>> -> memref<2x1x9x4xf32, #tpu.memory_space<any>>
    tpu.wait_dma2 semaphore(%arg8 : memref<!tpu.dma_semaphore, #tpu.memory_space<semaphore_mem>>) src(%48 : memref<2x1x9x4xf32, #tpu.memory_space<any>>) dst(%arg7 : memref<2x1x9x4xf32, #tpu.memory_space<vmem>>)
    %c0_53 = arith.constant 0 : index
    %c0_54 = arith.constant 0 : index
    %c0_55 = arith.constant 0 : index
    %c0_56 = arith.constant 0 : index
    %49 = vector.load %arg7[%c0_53, %c0_54, %c0_55, %c0_56] : memref<2x1x9x4xf32, #tpu.memory_space<vmem>>, vector<1x1x8x4xf32>
    %50 = vector.shape_cast %49 : vector<1x1x8x4xf32> to vector<1x8x4xf32>
    %c0_57 = arith.constant 0 : index
    %c0_58 = arith.constant 0 : index
    %c1_59 = arith.constant 1 : index
    %c0_60 = arith.constant 0 : index
    %c0_61 = arith.constant 0 : index
    %51 = vector.load %arg2[%c0_57, %c0_58, %c1_59, %c0_60, %c0_61] : memref<1x4x8x9x4xf32, #tpu.memory_space<vmem>>, vector<1x1x7x8x4xf32>
    %52 = vector.shape_cast %51 : vector<1x1x7x8x4xf32> to vector<7x8x4xf32>
    %53 = tpu.concatenate %52, %50 in 0 : vector<7x8x4xf32>, vector<1x8x4xf32> -> vector<8x8x4xf32>
    %54 = vector.shape_cast %53 : vector<8x8x4xf32> to vector<64x4xf32>
    %c6 = arith.constant 6 : index
    %c0_62 = arith.constant 0 : index
    %c0_63 = arith.constant 0 : index
    %55 = vector.load %arg4[%c6, %c0_62, %c0_63] : memref<9x4x128xf32, #tpu.memory_space<vmem>>, vector<1x4x128xf32>
    %56 = vector.shape_cast %55 : vector<1x4x128xf32> to vector<4x128xf32>
    %cst_64 = arith.constant dense<0.000000e+00> : vector<64x128xf32>
    %57 = tpu.matmul %54, %56, %cst_64 {dimension_numbers = #tpu.dot_dimension_numbers<[1], [0], [0], [1], [0, 0, 1, 1], [], []>} : vector<64x4xf32>, vector<4x128xf32>, vector<64x128xf32> -> vector<64x128xf32>
    %58 = arith.addf %46, %57 : vector<64x128xf32>
    %c1_65 = arith.constant 1 : index
    %c0_66 = arith.constant 0 : index
    %c0_67 = arith.constant 0 : index
    %c0_68 = arith.constant 0 : index
    %59 = vector.load %arg7[%c1_65, %c0_66, %c0_67, %c0_68] : memref<2x1x9x4xf32, #tpu.memory_space<vmem>>, vector<1x1x8x4xf32>
    %60 = vector.shape_cast %59 : vector<1x1x8x4xf32> to vector<1x8x4xf32>
    %c0_69 = arith.constant 0 : index
    %c1_70 = arith.constant 1 : index
    %c1_71 = arith.constant 1 : index
    %c0_72 = arith.constant 0 : index
    %c0_73 = arith.constant 0 : index
    %61 = vector.load %arg2[%c0_69, %c1_70, %c1_71, %c0_72, %c0_73] : memref<1x4x8x9x4xf32, #tpu.memory_space<vmem>>, vector<1x1x7x8x4xf32>
    %62 = vector.shape_cast %61 : vector<1x1x7x8x4xf32> to vector<7x8x4xf32>
    %63 = tpu.concatenate %62, %60 in 0 : vector<7x8x4xf32>, vector<1x8x4xf32> -> vector<8x8x4xf32>
    %64 = vector.shape_cast %63 : vector<8x8x4xf32> to vector<64x4xf32>
    %c7 = arith.constant 7 : index
    %c0_74 = arith.constant 0 : index
    %c0_75 = arith.constant 0 : index
    %65 = vector.load %arg4[%c7, %c0_74, %c0_75] : memref<9x4x128xf32, #tpu.memory_space<vmem>>, vector<1x4x128xf32>
    %66 = vector.shape_cast %65 : vector<1x4x128xf32> to vector<4x128xf32>
    %cst_76 = arith.constant dense<0.000000e+00> : vector<64x128xf32>
    %67 = tpu.matmul %64, %66, %cst_76 {dimension_numbers = #tpu.dot_dimension_numbers<[1], [0], [0], [1], [0, 0, 1, 1], [], []>} : vector<64x4xf32>, vector<4x128xf32>, vector<64x128xf32> -> vector<64x128xf32>
    %68 = arith.addf %58, %67 : vector<64x128xf32>
    %c0_77 = arith.constant 0 : index
    %c0_78 = arith.constant 0 : index
    %c1_79 = arith.constant 1 : index
    %c0_80 = arith.constant 0 : index
    %69 = vector.load %arg7[%c0_77, %c0_78, %c1_79, %c0_80] : memref<2x1x9x4xf32, #tpu.memory_space<vmem>>, vector<1x1x8x4xf32>
    %70 = vector.shape_cast %69 : vector<1x1x8x4xf32> to vector<1x8x4xf32>
    %c0_81 = arith.constant 0 : index
    %c0_82 = arith.constant 0 : index
    %c1_83 = arith.constant 1 : index
    %c1_84 = arith.constant 1 : index
    %c0_85 = arith.constant 0 : index
    %71 = vector.load %arg2[%c0_81, %c0_82, %c1_83, %c1_84, %c0_85] : memref<1x4x8x9x4xf32, #tpu.memory_space<vmem>>, vector<1x1x7x8x4xf32>
    %72 = vector.shape_cast %71 : vector<1x1x7x8x4xf32> to vector<7x8x4xf32>
    %73 = tpu.concatenate %72, %70 in 0 : vector<7x8x4xf32>, vector<1x8x4xf32> -> vector<8x8x4xf32>
    %74 = vector.shape_cast %73 : vector<8x8x4xf32> to vector<64x4xf32>
    %c8 = arith.constant 8 : index
    %c0_86 = arith.constant 0 : index
    %c0_87 = arith.constant 0 : index
    %75 = vector.load %arg4[%c8, %c0_86, %c0_87] : memref<9x4x128xf32, #tpu.memory_space<vmem>>, vector<1x4x128xf32>
    %76 = vector.shape_cast %75 : vector<1x4x128xf32> to vector<4x128xf32>
    %cst_88 = arith.constant dense<0.000000e+00> : vector<64x128xf32>
    %77 = tpu.matmul %74, %76, %cst_88 {dimension_numbers = #tpu.dot_dimension_numbers<[1], [0], [0], [1], [0, 0, 1, 1], [], []>} : vector<64x4xf32>, vector<4x128xf32>, vector<64x128xf32> -> vector<64x128xf32>
    %78 = arith.addf %68, %77 : vector<64x128xf32>
    %c0_89 = arith.constant 0 : index
    %c0_90 = arith.constant 0 : index
    %79 = vector.load %arg5[%c0_89, %c0_90] : memref<1x128xf32, #tpu.memory_space<vmem>>, vector<1x128xf32>
    %80 = vector.broadcast %79 : vector<1x128xf32> to vector<64x128xf32>
    %81 = arith.addf %78, %80 : vector<64x128xf32>
    %82 = vector.shape_cast %81 : vector<64x128xf32> to vector<8x8x128xf32>
    %c0_91 = arith.constant 0 : index
    %c0_92 = arith.constant 0 : index
    %c0_93 = arith.constant 0 : index
    %c0_94 = arith.constant 0 : index
    %83 = vector.load %arg6[%c0_91, %c0_92, %c0_93, %c0_94] : memref<1x8x8x128xf32, #tpu.memory_space<vmem>>, vector<1x8x8x128xf32>
    %84 = vector.shape_cast %83 : vector<1x8x8x128xf32> to vector<8x8x128xf32>
    %85 = vector.shape_cast %82 : vector<8x8x128xf32> to vector<1x8x8x128xf32>
    tpu.vector_store %arg6[%c0_91, %c0_92, %c0_93, %c0_94], %85 {strides = array<i32>} : memref<1x8x8x128xf32, #tpu.memory_space<vmem>>, vector<1x8x8x128xf32>,
    return
  }
  func.func @transform_0(%arg0: i32, %arg1: i32) -> (i32, i32, i32, i32, i32) {
    %c0_i32 = arith.constant 0 : i32
    %c0_i32_0 = arith.constant 0 : i32
    %c0_i32_1 = arith.constant 0 : i32
    %c0_i32_2 = arith.constant 0 : i32
    return %arg0, %c0_i32, %arg1, %c0_i32_0, %c0_i32_1 : i32, i32, i32, i32, i32
  }
  func.func @transform_2(%arg0: i32, %arg1: i32) -> (i32, i32, i32) {
    %c0_i32 = arith.constant 0 : i32
    %c0_i32_0 = arith.constant 0 : i32
    %c0_i32_1 = arith.constant 0 : i32
    %c0_i32_2 = arith.constant 0 : i32
    return %c0_i32, %c0_i32_0, %c0_i32_1 : i32, i32, i32
  }
  func.func @transform_3(%arg0: i32, %arg1: i32) -> (i32, i32) {
    %c0_i32 = arith.constant 0 : i32
    %c0_i32_0 = arith.constant 0 : i32
    %c0_i32_1 = arith.constant 0 : i32
    return %c0_i32, %c0_i32_0 : i32, i32
  }
  func.func @transform_4(%arg0: i32, %arg1: i32) -> (i32, i32, i32, i32) {
    %c0_i32 = arith.constant 0 : i32
    %c0_i32_0 = arith.constant 0 : i32
    %c0_i32_1 = arith.constant 0 : i32
    return %arg0, %arg1, %c0_i32, %c0_i32_0 : i32, i32, i32, i32
  }
}

</mosaic_0001>

<llo_original>
// kernel: downsample.1
$region0: #{downsample.1}
  #allocation0 [shape = 'u32[]', space=smem, size = 0x4, offset = 0x4, fixed_abs, tag = 'smem constant byte address 0x4 - core index']
  #allocation1 [shape = 'u32[144,128]{1,0:T(1,128)}', space=vmem, size = 0x12000, scoped, tag = 'internal scratch']
  #allocation2 [shape = 'f32[2,1,9,4]{3,2,1,0:T(8,128)}', space=vmem, size = 0x4000, scoped, tag = 'scratch operand']
  #allocation3 [shape = 's32[1]{0}', space=sflag, size = 0x4, scoped, tag = 'scratch operand']
  #allocation5 [shape = 's32[]', space=sflag, size = 0x4, offset = 0, fixed_abs, tag = 'sflag constant byte address 0x0 - dummy sync flag']
  %s0 = inlined_call_operand.vmem [shape: f32[2,4,9,9,4], index: 0, kind: input, shape index: {}, may-alias: {0,1}]
  %s1 = inlined_call_operand.vmem [shape: f32[2,4,9,9,4], index: 1, kind: input, shape index: {}, may-alias: {0,1}]
  %s2 = inlined_call_operand.vmem [shape: f32[9,4,128], index: 2, kind: input, shape index: {}]
  %s3 = inlined_call_operand.vmem [shape: f32[1,128], index: 3, kind: input, shape index: {}]
  %s4 = inlined_call_operand.vmem [shape: f32[2,8,8,128], index: 4, kind: output, shape index: {}]
  %s5 = sld [smem:[#allocation0]]
  $region134: #{downsample.1} parent=0
    _
  %s7 = ssub.s32 1, %s5
  %s8 = scalar_select 0, %s7, %s5
  $region1: #{downsample.1} parent=0
    #allocation4 [shape = 'u8[524288]{0}', space=vmem, size = 0x80000, scoped, tag = 'input window, operand 0']
    loop: start=0, step=1, limit=4
    $region2: #{downsample.1} parent=1 // loop_pre_header
      _
    $region3: #{downsample.1} parent=1 // loop_header
      %s10 = sphi 0, %s14
      %p11 = scmp.ge.s32.totalorder %s10, 4
      %s17 = sphi 0, %s29
      %s18 = sphi 0, %s25
      %s19 = sphi 0, %s17
      %s20 = sphi 0, %s18
      %s21 = sphi 0, %s19
      %s22 = sphi 0, %s20
      %s34 = sphi 0, %s36
      %s37 = sphi 0, %s34
      %s38 = sphi 0, %s37
      %s54 = sphi 0, %s38
      %s58 = sphi 0, %s58
      %s60 = sphi 0, %s58
      %s61 = sphi 0, %s60
      %s75 = sphi 0, %s61
      %s79 = sphi 0, %s79
      %s81 = sphi 0, %s79
      %s82 = sphi 0, %s81
      %s96 = sphi 0, %s82
      %s104 = sphi 0, %s106
      %s107 = sphi 0, %s104
      %s108 = sphi 0, %s107
      %s124 = sphi 0, %s108
    $region4: #{downsample.1} parent=1 // loop_header_branch
      %13 = sbr.rel (%p11) target = $region8
    $region5: #{downsample.1} parent=1 // loop_body
      %s15 = ssub.s32 %s10, 1
      %s16 = ssub.s32 %s10, 2
      %s23 = sadd.s32 1, %s18
      %p24 = scmp.ge.s32.totalorder %s23, 1
      %s25 = scalar_select %p24, 0, %s23
      %s26 = sadd.s32 1, %s17
      %s27 = scalar_select %p24, %s26, %s17
      %p28 = scmp.ge.s32.totalorder %s27, 2
      %s29 = scalar_select %p28, 0, %s27
      %s30 = ssub.s32 %s17, %s29
      %s31 = ssub.s32 %s18, %s25
      %s32 = sor.u32 %s30, %s31
      %p33 = scmp.eq.s32.totalorder %s32, 0
      %s35 = sadd.s32 %s34, 1
      %s36 = scalar_select %p33, %s34, %s35
      %p39 = pneg %p33
      %p40 = scmp.eq.s32.totalorder %s10, 1
      %p41 = por %p39, %p40
      %p42 = scmp.ne.s32.totalorder %s34, %s37
      %p43 = scmp.eq.s32.totalorder %s10, 0
      %p44 = por %p42, %p43
      %p45 = scmp.ne.s32.totalorder %s34, %s37
      %p46 = scmp.eq.s32.totalorder %s15, 1
      %p47 = por %p45, %p46
      %p48 = scmp.ne.s32.totalorder %s37, %s38
      %p49 = scmp.eq.s32.totalorder %s15, 0
      %p50 = por %p48, %p49
      %p51 = scmp.ne.s32.totalorder %s37, %s38
      %p52 = scmp.eq.s32.totalorder %s16, 1
      %p53 = por %p51, %p52
      %p55 = scmp.ne.s32.totalorder %s38, %s54
      %p56 = scmp.eq.s32.totalorder %s16, 0
      %p57 = por %p55, %p56
      %s59 = sadd.s32 %s58, 1
      %p62 = scmp.eq.s32.totalorder %s10, 1
      %p63 = scmp.ne.s32.totalorder %s58, %s60
      %p64 = scmp.eq.s32.totalorder %s10, 0
      %p65 = por %p63, %p64
      %p66 = scmp.ne.s32.totalorder %s58, %s60
      %p67 = scmp.eq.s32.totalorder %s15, 1
      %p68 = por %p66, %p67
      %p69 = scmp.ne.s32.totalorder %s60, %s61
      %p70 = scmp.eq.s32.totalorder %s15, 0
      %p71 = por %p69, %p70
      %p72 = scmp.ne.s32.totalorder %s60, %s61
      %p73 = scmp.eq.s32.totalorder %s16, 1
      %p74 = por %p72, %p73
      %p76 = scmp.ne.s32.totalorder %s61, %s75
      %p77 = scmp.eq.s32.totalorder %s16, 0
      %p78 = por %p76, %p77
      %s80 = sadd.s32 %s79, 1
      %p83 = scmp.eq.s32.totalorder %s10, 1
      %p84 = scmp.ne.s32.totalorder %s79, %s81
      %p85 = scmp.eq.s32.totalorder %s10, 0
      %p86 = por %p84, %p85
      %p87 = scmp.ne.s32.totalorder %s79, %s81
      %p88 = scmp.eq.s32.totalorder %s15, 1
      %p89 = por %p87, %p88
      %p90 = scmp.ne.s32.totalorder %s81, %s82
      %p91 = scmp.eq.s32.totalorder %s15, 0
      %p92 = por %p90, %p91
      %p93 = scmp.ne.s32.totalorder %s81, %s82
      %p94 = scmp.eq.s32.totalorder %s16, 1
      %p95 = por %p93, %p94
      %p97 = scmp.ne.s32.totalorder %s82, %s96
      %p98 = scmp.eq.s32.totalorder %s16, 0
      %p99 = por %p97, %p98
      %s100 = ssub.s32 %s17, %s29
      %s101 = ssub.s32 %s18, %s25
      %s102 = sor.u32 %s100, %s101
      %p103 = scmp.eq.s32.totalorder %s102, 0
      %s105 = sadd.s32 %s104, 1
      %s106 = scalar_select %p103, %s104, %s105
      %p109 = pneg %p103
      %p110 = scmp.eq.s32.totalorder %s10, 1
      %p111 = por %p109, %p110
      %p112 = scmp.ne.s32.totalorder %s104, %s107
      %p113 = scmp.eq.s32.totalorder %s10, 0
      %p114 = por %p112, %p113
      %p115 = scmp.ne.s32.totalorder %s104, %s107
      %p116 = scmp.eq.s32.totalorder %s15, 1
      %p117 = por %p115, %p116
      %p118 = scmp.ne.s32.totalorder %s107, %s108
      %p119 = scmp.eq.s32.totalorder %s15, 0
      %p120 = por %p118, %p119
      %p121 = scmp.ne.s32.totalorder %s107, %s108
      %p122 = scmp.eq.s32.totalorder %s16, 1
      %p123 = por %p121, %p122
      %p125 = scmp.ne.s32.totalorder %s108, %s124
      %p126 = scmp.eq.s32.totalorder %s16, 0
      %p127 = por %p125, %p126
      %p128 = scmp.le.s32.totalorder 1, %s10
      %p129 = scmp.lt.s32.totalorder %s10, 3
      %p130 = pnand %p128, %p129
      %p131 = pneg %p130
      // Predicated region
      $region9: #{downsample.1} parent=5 // pred_check
        _
      $region10: #{downsample.1} parent=5 // pred_check_branch
        %133 = sbr.rel (%p130) target = $region12
      $region11: #{downsample.1} parent=5 // pred_region
        %s134 = ssub.s32 %s10, 1
        // Predicated region
        $region13: #{downsample.1} parent=11 // pred_check
          %p135 = pneg %p71
        $region14: #{downsample.1} parent=11 // pred_check_branch
          %137 = sbr.rel (%p135) target = $region16
        $region15: #{downsample.1} parent=11 // pred_region
          _
        $region16: #{downsample.1} parent=11 // pred_fallthru
          _
        // Predicated region
        $region17: #{downsample.1} parent=11 // pred_check
          %p138 = pneg %p92
        $region18: #{downsample.1} parent=11 // pred_check_branch
          %140 = sbr.rel (%p138) target = $region20
        $region19: #{downsample.1} parent=11 // pred_region
          _
        $region20: #{downsample.1} parent=11 // pred_fallthru
          _
      $region12: #{downsample.1} parent=5 // pred_fallthru
        _
      %p141 = scmp.lt.s32.totalorder %s10, 2
      // Predicated region
      $region21: #{downsample.1} parent=5 // pred_check
        %p142 = pneg %p141
      $region22: #{downsample.1} parent=5 // pred_check_branch
        %144 = sbr.rel (%p142) target = $region24
      $region23: #{downsample.1} parent=5 // pred_region
        // Predicated region
        $region25: #{downsample.1} parent=23 // pred_check
          %p145 = pneg %p44
        $region26: #{downsample.1} parent=23 // pred_check_branch
          %147 = sbr.rel (%p145) target = $region28
        $region27: #{downsample.1} parent=23 // pred_region
          %s148 = sand.u32 %s34, 1
          %s149 = sand.u32 %s34, 1
          %s150 = smul.addr %s149, 512
          %s151 = scalar_lea.vmem [#allocation4], %s150
          %s152 = smul.u32 8, %s18
          %s153 = ssub.s32 9, %s152
          %p154 = scmp.lt.s32.totalorder %s153, 8
          %s155 = scalar_select %p154, %s153, 8
          %s156 = smul.u32 512, %s155
          %s157 = smul.u32 %s156, 2
          %p158 = scmp.ne.s32.totalorder 0, %s157
          %s159 = smul.addr %s152, 2
          %s160 = smul.addr %s17, 72
          %s161 = sadd.s32 %s159, %s160
          %s162 = smul.addr %s161, 8
          %s163 = scalar_lea.vmem %s0, %s162
          %s164 = smul.u32 %s155, 2
          // Predicated region
          $region29: #{downsample.1} parent=27 // pred_check
            %p165 = pneg %p158
          $region30: #{downsample.1} parent=27 // pred_check_branch
            %167 = sbr.rel (%p165) target = $region32
          $region31: #{downsample.1} parent=27 // pred_region
            // Predicated region
            $region33: #{downsample.1} parent=31 // pred_check
              _
            $region34: #{downsample.1} parent=31 // pred_check_branch
              %169 = sbr.rel (0) target = $region36
            $region35: #{downsample.1} parent=31 // pred_region
              // Predicated region
              $region55: #{downsample.1} parent=35 // pred_check
                _
              $region56: #{downsample.1} parent=35 // pred_check_branch
                %350 = sbr.rel (0) target = $region58
              $region57: #{downsample.1} parent=35 // pred_region
                %s351 = sshrl.u32 %s164, 4
                // While loop
                $region59: #{downsample.1} parent=57 // loop_pre_header
                  _
                $region60: #{downsample.1} parent=57 // loop_header
                  %s353 = sphi 0, %s355
                  %p354 = scmp.ge.s32.totalorder %s353, %s351
                  %s358 = sphi 0, %s491
                  %s359 = sphi %s163, %s494
                  %s360 = sphi %s151, %s495
                $region61: #{downsample.1} parent=57 // loop_header_branch
                  %357 = sbr.rel (%p354) target = $region65
                $region62: #{downsample.1} parent=57 // loop_body
                  %v361 = vld [vmem:[%s359] sm:$0xff]
                  %362 = vst [vmem:[%s360] sm:$0xff] %v361
                  %v363 = vld [vmem:[%s359 + $0x8] sm:$0xff]
                  %364 = vst [vmem:[%s360 + $0x8] sm:$0xff] %v363
                  %v365 = vld [vmem:[%s359 + $0x10] sm:$0xff]
                  %366 = vst [vmem:[%s360 + $0x10] sm:$0xff] %v365
                  %v367 = vld [vmem:[%s359 + $0x18] sm:$0xff]
                  %368 = vst [vmem:[%s360 + $0x18] sm:$0xff] %v367
                  %v369 = vld [vmem:[%s359 + $0x20] sm:$0xff]
                  %370 = vst [vmem:[%s360 + $0x20] sm:$0xff] %v369
                  %v371 = vld [vmem:[%s359 + $0x28] sm:$0xff]
                  %372 = vst [vmem:[%s360 + $0x28] sm:$0xff] %v371
                  %v373 = vld [vmem:[%s359 + $0x30] sm:$0xff]
                  %374 = vst [vmem:[%s360 + $0x30] sm:$0xff] %v373
                  %v375 = vld [vmem:[%s359 + $0x38] sm:$0xff]
                  %376 = vst [vmem:[%s360 + $0x38] sm:$0xff] %v375
                  %v377 = vld [vmem:[%s359 + $0x40] sm:$0xff]
                  %378 = vst [vmem:[%s360 + $0x40] sm:$0xff] %v377
                  %v379 = vld [vmem:[%s359 + $0x48] sm:$0xff]
                  %380 = vst [vmem:[%s360 + $0x48] sm:$0xff] %v379
                  %v381 = vld [vmem:[%s359 + $0x50] sm:$0xff]
                  %382 = vst [vmem:[%s360 + $0x50] sm:$0xff] %v381
                  %v383 = vld [vmem:[%s359 + $0x58] sm:$0xff]
                  %384 = vst [vmem:[%s360 + $0x58] sm:$0xff] %v383
                  %v385 = vld [vmem:[%s359 + $0x60] sm:$0xff]
                  %386 = vst [vmem:[%s360 + $0x60] sm:$0xff] %v385
                  %v387 = vld [vmem:[%s359 + $0x68] sm:$0xff]
                  %388 = vst [vmem:[%s360 + $0x68] sm:$0xff] %v387
                  %v389 = vld [vmem:[%s359 + $0x70] sm:$0xff]
                  %390 = vst [vmem:[%s360 + $0x70] sm:$0xff] %v389
                  %v391 = vld [vmem:[%s359 + $0x78] sm:$0xff]
                  %392 = vst [vmem:[%s360 + $0x78] sm:$0xff] %v391
                  %v393 = vld [vmem:[%s359 + $0x90] sm:$0xff]
                  %394 = vst [vmem:[%s360 + $0x80] sm:$0xff] %v393
                  %v395 = vld [vmem:[%s359 + $0x98] sm:$0xff]
                  %396 = vst [vmem:[%s360 + $0x88] sm:$0xff] %v395
                  %v397 = vld [vmem:[%s359 + $0xa0] sm:$0xff]
                  %398 = vst [vmem:[%s360 + $0x90] sm:$0xff] %v397
                  %v399 = vld [vmem:[%s359 + $0xa8] sm:$0xff]
                  %400 = vst [vmem:[%s360 + $0x98] sm:$0xff] %v399
                  %v401 = vld [vmem:[%s359 + $0xb0] sm:$0xff]
                  %402 = vst [vmem:[%s360 + $0xa0] sm:$0xff] %v401
                  %v403 = vld [vmem:[%s359 + $0xb8] sm:$0xff]
                  %404 = vst [vmem:[%s360 + $0xa8] sm:$0xff] %v403
                  %v405 = vld [vmem:[%s359 + $0xc0] sm:$0xff]
                  %406 = vst [vmem:[%s360 + $0xb0] sm:$0xff] %v405
                  %v407 = vld [vmem:[%s359 + $0xc8] sm:$0xff]
                  %408 = vst [vmem:[%s360 + $0xb8] sm:$0xff] %v407
                  %v409 = vld [vmem:[%s359 + $0xd0] sm:$0xff]
                  %410 = vst [vmem:[%s360 + $0xc0] sm:$0xff] %v409
                  %v411 = vld [vmem:[%s359 + $0xd8] sm:$0xff]
                  %412 = vst [vmem:[%s360 + $0xc8] sm:$0xff] %v411
                  %v413 = vld [vmem:[%s359 + $0xe0] sm:$0xff]
                  %414 = vst [vmem:[%s360 + $0xd0] sm:$0xff] %v413
                  %v415 = vld [vmem:[%s359 + $0xe8] sm:$0xff]
                  %416 = vst [vmem:[%s360 + $0xd8] sm:$0xff] %v415
                  %v417 = vld [vmem:[%s359 + $0xf0] sm:$0xff]
                  %418 = vst [vmem:[%s360 + $0xe0] sm:$0xff] %v417
                  %v419 = vld [vmem:[%s359 + $0xf8] sm:$0xff]
                  %420 = vst [vmem:[%s360 + $0xe8] sm:$0xff] %v419
                  %v421 = vld [vmem:[%s359 + $0x100] sm:$0xff]
                  %422 = vst [vmem:[%s360 + $0xf0] sm:$0xff] %v421
                  %v423 = vld [vmem:[%s359 + $0x108] sm:$0xff]
                  %424 = vst [vmem:[%s360 + $0xf8] sm:$0xff] %v423
                  %v425 = vld [vmem:[%s359 + $0x120] sm:$0xff]
                  %426 = vst [vmem:[%s360 + $0x100] sm:$0xff] %v425
                  %v427 = vld [vmem:[%s359 + $0x128] sm:$0xff]
                  %428 = vst [vmem:[%s360 + $0x108] sm:$0xff] %v427
                  %v429 = vld [vmem:[%s359 + $0x130] sm:$0xff]
                  %430 = vst [vmem:[%s360 + $0x110] sm:$0xff] %v429
                  %v431 = vld [vmem:[%s359 + $0x138] sm:$0xff]
                  %432 = vst [vmem:[%s360 + $0x118] sm:$0xff] %v431
                  %v433 = vld [vmem:[%s359 + $0x140] sm:$0xff]
                  %434 = vst [vmem:[%s360 + $0x120] sm:$0xff] %v433
                  %v435 = vld [vmem:[%s359 + $0x148] sm:$0xff]
                  %436 = vst [vmem:[%s360 + $0x128] sm:$0xff] %v435
                  %v437 = vld [vmem:[%s359 + $0x150] sm:$0xff]
                  %438 = vst [vmem:[%s360 + $0x130] sm:$0xff] %v437
                  %v439 = vld [vmem:[%s359 + $0x158] sm:$0xff]
                  %440 = vst [vmem:[%s360 + $0x138] sm:$0xff] %v439
                  %v441 = vld [vmem:[%s359 + $0x160] sm:$0xff]
                  %442 = vst [vmem:[%s360 + $0x140] sm:$0xff] %v441
                  %v443 = vld [vmem:[%s359 + $0x168] sm:$0xff]
                  %444 = vst [vmem:[%s360 + $0x148] sm:$0xff] %v443
                  %v445 = vld [vmem:[%s359 + $0x170] sm:$0xff]
                  %446 = vst [vmem:[%s360 + $0x150] sm:$0xff] %v445
                  %v447 = vld [vmem:[%s359 + $0x178] sm:$0xff]
                  %448 = vst [vmem:[%s360 + $0x158] sm:$0xff] %v447
                  %v449 = vld [vmem:[%s359 + $0x180] sm:$0xff]
                  %450 = vst [vmem:[%s360 + $0x160] sm:$0xff] %v449
                  %v451 = vld [vmem:[%s359 + $0x188] sm:$0xff]
                  %452 = vst [vmem:[%s360 + $0x168] sm:$0xff] %v451
                  %v453 = vld [vmem:[%s359 + $0x190] sm:$0xff]
                  %454 = vst [vmem:[%s360 + $0x170] sm:$0xff] %v453
                  %v455 = vld [vmem:[%s359 + $0x198] sm:$0xff]
                  %456 = vst [vmem:[%s360 + $0x178] sm:$0xff] %v455
                  %v457 = vld [vmem:[%s359 + $0x1b0] sm:$0xff]
                  %458 = vst [vmem:[%s360 + $0x180] sm:$0xff] %v457
                  %v459 = vld [vmem:[%s359 + $0x1b8] sm:$0xff]
                  %460 = vst [vmem:[%s360 + $0x188] sm:$0xff] %v459
                  %v461 = vld [vmem:[%s359 + $0x1c0] sm:$0xff]
                  %462 = vst [vmem:[%s360 + $0x190] sm:$0xff] %v461
                  %v463 = vld [vmem:[%s359 + $0x1c8] sm:$0xff]
                  %464 = vst [vmem:[%s360 + $0x198] sm:$0xff] %v463
                  %v465 = vld [vmem:[%s359 + $0x1d0] sm:$0xff]
                  %466 = vst [vmem:[%s360 + $0x1a0] sm:$0xff] %v465
                  %v467 = vld [vmem:[%s359 + $0x1d8] sm:$0xff]
                  %468 = vst [vmem:[%s360 + $0x1a8] sm:$0xff] %v467
                  %v469 = vld [vmem:[%s359 + $0x1e0] sm:$0xff]
                  %470 = vst [vmem:[%s360 + $0x1b0] sm:$0xff] %v469
                  %v471 = vld [vmem:[%s359 + $0x1e8] sm:$0xff]
                  %472 = vst [vmem:[%s360 + $0x1b8] sm:$0xff] %v471
                  %v473 = vld [vmem:[%s359 + $0x1f0] sm:$0xff]
                  %474 = vst [vmem:[%s360 + $0x1c0] sm:$0xff] %v473
                  %v475 = vld [vmem:[%s359 + $0x1f8] sm:$0xff]
                  %476 = vst [vmem:[%s360 + $0x1c8] sm:$0xff] %v475
                  %v477 = vld [vmem:[%s359 + $0x200] sm:$0xff]
                  %478 = vst [vmem:[%s360 + $0x1d0] sm:$0xff] %v477
                  %v479 = vld [vmem:[%s359 + $0x208] sm:$0xff]
                  %480 = vst [vmem:[%s360 + $0x1d8] sm:$0xff] %v479
                  %v481 = vld [vmem:[%s359 + $0x210] sm:$0xff]
                  %482 = vst [vmem:[%s360 + $0x1e0] sm:$0xff] %v481
                  %v483 = vld [vmem:[%s359 + $0x218] sm:$0xff]
                  %484 = vst [vmem:[%s360 + $0x1e8] sm:$0xff] %v483
                  %v485 = vld [vmem:[%s359 + $0x220] sm:$0xff]
                  %486 = vst [vmem:[%s360 + $0x1f0] sm:$0xff] %v485
                  %v487 = vld [vmem:[%s359 + $0x228] sm:$0xff]
                  %488 = vst [vmem:[%s360 + $0x1f8] sm:$0xff] %v487
                  %s489 = sadd.s32 1, %s358
                  %p490 = scmp.ge.s32.totalorder %s489, %s351
                  %s491 = scalar_select %p490, 0, %s489
                  %s492 = smul.u32 %s491, 128
                  %s493 = smul.u32 %s491, 128
                  %s494 = scalar_lea.vmem %s163, %s492
                  %s495 = scalar_lea.vmem %s151, %s493 [#allocation4]
                $region63: #{downsample.1} parent=57 // loop_footer
                  %s355 = sadd.s32 %s353, 1
                $region64: #{downsample.1} parent=57 // loop_footer_branch
                  %352 = sbr.rel target = $region60
                $region65: #{downsample.1} parent=57 // loop_exit
                  _
                %s496 = sshrl.u32 %s164, 4
                %s497 = sand.u32 %s164, 15
                %s498 = smul.u32 %s496, 16
                %s499 = smul.u32 8, %s498
                %s500 = scalar_lea.vmem %s163, %s499
                %s501 = smul.u32 8, %s498
                %s502 = scalar_lea.vmem %s151, %s501 [#allocation4]
                // While loop
                $region66: #{downsample.1} parent=57 // loop_pre_header
                  _
                $region67: #{downsample.1} parent=57 // loop_header
                  %s504 = sphi 0, %s506
                  %p505 = scmp.ge.s32.totalorder %s504, %s497
                  %s509 = sphi 0, %s522
                  %s510 = sphi %s500, %s525
                  %s511 = sphi %s502, %s526
                $region68: #{downsample.1} parent=57 // loop_header_branch
                  %508 = sbr.rel (%p505) target = $region72
                $region69: #{downsample.1} parent=57 // loop_body
                  %v512 = vld [vmem:[%s510] sm:$0xff]
                  %513 = vst [vmem:[%s511] sm:$0xff] %v512
                  %v514 = vld [vmem:[%s510 + $0x90] sm:$0xff]
                  %515 = vst [vmem:[%s511 + $0x80] sm:$0xff] %v514
                  %v516 = vld [vmem:[%s510 + $0x120] sm:$0xff]
                  %517 = vst [vmem:[%s511 + $0x100] sm:$0xff] %v516
                  %v518 = vld [vmem:[%s510 + $0x1b0] sm:$0xff]
                  %519 = vst [vmem:[%s511 + $0x180] sm:$0xff] %v518
                  %s520 = sadd.s32 1, %s509
                  %p521 = scmp.ge.s32.totalorder %s520, %s497
                  %s522 = scalar_select %p521, 0, %s520
                  %s523 = smul.u32 %s522, 8
                  %s524 = smul.u32 %s522, 8
                  %s525 = scalar_lea.vmem %s500, %s523
                  %s526 = scalar_lea.vmem %s502, %s524 [#allocation4]
                $region70: #{downsample.1} parent=57 // loop_footer
                  %s506 = sadd.s32 %s504, 1
                $region71: #{downsample.1} parent=57 // loop_footer_branch
                  %503 = sbr.rel target = $region67
                $region72: #{downsample.1} parent=57 // loop_exit
                  _
              $region58: #{downsample.1} parent=35 // pred_fallthru
                _
              // Predicated region
              $region73: #{downsample.1} parent=35 // pred_check
                _
              $region74: #{downsample.1} parent=35 // pred_check_branch
                %528 = sbr.rel target = $region76
              $region75: #{downsample.1} parent=35 // pred_region
                _
              $region76: #{downsample.1} parent=35 // pred_fallthru
                _
            $region36: #{downsample.1} parent=31 // pred_fallthru
              _
            // Predicated region
            $region37: #{downsample.1} parent=31 // pred_check
              _
            $region38: #{downsample.1} parent=31 // pred_check_branch
              %171 = sbr.rel target = $region40
            $region39: #{downsample.1} parent=31 // pred_region
              %s173 = sshrl.u32 %s164, 4
              // While loop
              $region41: #{downsample.1} parent=39 // loop_pre_header
                _
              $region42: #{downsample.1} parent=39 // loop_header
                %s175 = sphi 0, %s177
                %p176 = scmp.ge.s32.totalorder %s175, %s173
                %s180 = sphi 0, %s313
                %s181 = sphi %s163, %s316
                %s182 = sphi %s151, %s317
              $region43: #{downsample.1} parent=39 // loop_header_branch
                %179 = sbr.rel (%p176) target = $region47
              $region44: #{downsample.1} parent=39 // loop_body
                %v183 = vld [vmem:[%s181] sm:$0xff]
                %184 = vst [vmem:[%s182] sm:$0xff] %v183
                %v185 = vld [vmem:[%s181 + $0x8] sm:$0xff]
                %186 = vst [vmem:[%s182 + $0x8] sm:$0xff] %v185
                %v187 = vld [vmem:[%s181 + $0x10] sm:$0xff]
                %188 = vst [vmem:[%s182 + $0x10] sm:$0xff] %v187
                %v189 = vld [vmem:[%s181 + $0x18] sm:$0xff]
                %190 = vst [vmem:[%s182 + $0x18] sm:$0xff] %v189
                %v191 = vld [vmem:[%s181 + $0x20] sm:$0xff]
                %192 = vst [vmem:[%s182 + $0x20] sm:$0xff] %v191
                %v193 = vld [vmem:[%s181 + $0x28] sm:$0xff]
                %194 = vst [vmem:[%s182 + $0x28] sm:$0xff] %v193
                %v195 = vld [vmem:[%s181 + $0x30] sm:$0xff]
                %196 = vst [vmem:[%s182 + $0x30] sm:$0xff] %v195
                %v197 = vld [vmem:[%s181 + $0x38] sm:$0xff]
                %198 = vst [vmem:[%s182 + $0x38] sm:$0xff] %v197
                %v199 = vld [vmem:[%s181 + $0x40] sm:$0xff]
                %200 = vst [vmem:[%s182 + $0x40] sm:$0xff] %v199
                %v201 = vld [vmem:[%s181 + $0x48] sm:$0xff]
                %202 = vst [vmem:[%s182 + $0x48] sm:$0xff] %v201
                %v203 = vld [vmem:[%s181 + $0x50] sm:$0xff]
                %204 = vst [vmem:[%s182 + $0x50] sm:$0xff] %v203
                %v205 = vld [vmem:[%s181 + $0x58] sm:$0xff]
                %206 = vst [vmem:[%s182 + $0x58] sm:$0xff] %v205
                %v207 = vld [vmem:[%s181 + $0x60] sm:$0xff]
                %208 = vst [vmem:[%s182 + $0x60] sm:$0xff] %v207
                %v209 = vld [vmem:[%s181 + $0x68] sm:$0xff]
                %210 = vst [vmem:[%s182 + $0x68] sm:$0xff] %v209
                %v211 = vld [vmem:[%s181 + $0x70] sm:$0xff]
                %212 = vst [vmem:[%s182 + $0x70] sm:$0xff] %v211
                %v213 = vld [vmem:[%s181 + $0x78] sm:$0xff]
                %214 = vst [vmem:[%s182 + $0x78] sm:$0xff] %v213
                %v215 = vld [vmem:[%s181 + $0x90] sm:$0xff]
                %216 = vst [vmem:[%s182 + $0x80] sm:$0xff] %v215
                %v217 = vld [vmem:[%s181 + $0x98] sm:$0xff]
                %218 = vst [vmem:[%s182 + $0x88] sm:$0xff] %v217
                %v219 = vld [vmem:[%s181 + $0xa0] sm:$0xff]
                %220 = vst [vmem:[%s182 + $0x90] sm:$0xff] %v219
                %v221 = vld [vmem:[%s181 + $0xa8] sm:$0xff]
                %222 = vst [vmem:[%s182 + $0x98] sm:$0xff] %v221
                %v223 = vld [vmem:[%s181 + $0xb0] sm:$0xff]
                %224 = vst [vmem:[%s182 + $0xa0] sm:$0xff] %v223
                %v225 = vld [vmem:[%s181 + $0xb8] sm:$0xff]
                %226 = vst [vmem:[%s182 + $0xa8] sm:$0xff] %v225
                %v227 = vld [vmem:[%s181 + $0xc0] sm:$0xff]
                %228 = vst [vmem:[%s182 + $0xb0] sm:$0xff] %v227
                %v229 = vld [vmem:[%s181 + $0xc8] sm:$0xff]
                %230 = vst [vmem:[%s182 + $0xb8] sm:$0xff] %v229
                %v231 = vld [vmem:[%s181 + $0xd0] sm:$0xff]
                %232 = vst [vmem:[%s182 + $0xc0] sm:$0xff] %v231
                %v233 = vld [vmem:[%s181 + $0xd8] sm:$0xff]
                %234 = vst [vmem:[%s182 + $0xc8] sm:$0xff] %v233
                %v235 = vld [vmem:[%s181 + $0xe0] sm:$0xff]
                %236 = vst [vmem:[%s182 + $0xd0] sm:$0xff] %v235
                %v237 = vld [vmem:[%s181 + $0xe8] sm:$0xff]
                %238 = vst [vmem:[%s182 + $0xd8] sm:$0xff] %v237
                %v239 = vld [vmem:[%s181 + $0xf0] sm:$0xff]
                %240 = vst [vmem:[%s182 + $0xe0] sm:$0xff] %v239
                %v241 = vld [vmem:[%s181 + $0xf8] sm:$0xff]
                %242 = vst [vmem:[%s182 + $0xe8] sm:$0xff] %v241
                %v243 = vld [vmem:[%s181 + $0x100] sm:$0xff]
                %244 = vst [vmem:[%s182 + $0xf0] sm:$0xff] %v243
                %v245 = vld [vmem:[%s181 + $0x108] sm:$0xff]
                %246 = vst [vmem:[%s182 + $0xf8] sm:$0xff] %v245
                %v247 = vld [vmem:[%s181 + $0x120] sm:$0xff]
                %248 = vst [vmem:[%s182 + $0x100] sm:$0xff] %v247
                %v249 = vld [vmem:[%s181 + $0x128] sm:$0xff]
                %250 = vst [vmem:[%s182 + $0x108] sm:$0xff] %v249
                %v251 = vld [vmem:[%s181 + $0x130] sm:$0xff]
                %252 = vst [vmem:[%s182 + $0x110] sm:$0xff] %v251
                %v253 = vld [vmem:[%s181 + $0x138] sm:$0xff]
                %254 = vst [vmem:[%s182 + $0x118] sm:$0xff] %v253
                %v255 = vld [vmem:[%s181 + $0x140] sm:$0xff]
                %256 = vst [vmem:[%s182 + $0x120] sm:$0xff] %v255
                %v257 = vld [vmem:[%s181 + $0x148] sm:$0xff]
                %258 = vst [vmem:[%s182 + $0x128] sm:$0xff] %v257
                %v259 = vld [vmem:[%s181 + $0x150] sm:$0xff]
                %260 = vst [vmem:[%s182 + $0x130] sm:$0xff] %v259
                %v261 = vld [vmem:[%s181 + $0x158] sm:$0xff]
                %262 = vst [vmem:[%s182 + $0x138] sm:$0xff] %v261
                %v263 = vld [vmem:[%s181 + $0x160] sm:$0xff]
                %264 = vst [vmem:[%s182 + $0x140] sm:$0xff] %v263
                %v265 = vld [vmem:[%s181 + $0x168] sm:$0xff]
                %266 = vst [vmem:[%s182 + $0x148] sm:$0xff] %v265
                %v267 = vld [vmem:[%s181 + $0x170] sm:$0xff]
                %268 = vst [vmem:[%s182 + $0x150] sm:$0xff] %v267
                %v269 = vld [vmem:[%s181 + $0x178] sm:$0xff]
                %270 = vst [vmem:[%s182 + $0x158] sm:$0xff] %v269
                %v271 = vld [vmem:[%s181 + $0x180] sm:$0xff]
                %272 = vst [vmem:[%s182 + $0x160] sm:$0xff] %v271
                %v273 = vld [vmem:[%s181 + $0x188] sm:$0xff]
                %274 = vst [vmem:[%s182 + $0x168] sm:$0xff] %v273
                %v275 = vld [vmem:[%s181 + $0x190] sm:$0xff]
                %276 = vst [vmem:[%s182 + $0x170] sm:$0xff] %v275
                %v277 = vld [vmem:[%s181 + $0x198] sm:$0xff]
                %278 = vst [vmem:[%s182 + $0x178] sm:$0xff] %v277
                %v279 = vld [vmem:[%s181 + $0x1b0] sm:$0xff]
                %280 = vst [vmem:[%s182 + $0x180] sm:$0xff] %v279
                %v281 = vld [vmem:[%s181 + $0x1b8] sm:$0xff]
                %282 = vst [vmem:[%s182 + $0x188] sm:$0xff] %v281
                %v283 = vld [vmem:[%s181 + $0x1c0] sm:$0xff]
                %284 = vst [vmem:[%s182 + $0x190] sm:$0xff] %v283
                %v285 = vld [vmem:[%s181 + $0x1c8] sm:$0xff]
                %286 = vst [vmem:[%s182 + $0x198] sm:$0xff] %v285
                %v287 = vld [vmem:[%s181 + $0x1d0] sm:$0xff]
                %288 = vst [vmem:[%s182 + $0x1a0] sm:$0xff] %v287
                %v289 = vld [vmem:[%s181 + $0x1d8] sm:$0xff]
                %290 = vst [vmem:[%s182 + $0x1a8] sm:$0xff] %v289
                %v291 = vld [vmem:[%s181 + $0x1e0] sm:$0xff]
                %292 = vst [vmem:[%s182 + $0x1b0] sm:$0xff] %v291
                %v293 = vld [vmem:[%s181 + $0x1e8] sm:$0xff]
                %294 = vst [vmem:[%s182 + $0x1b8] sm:$0xff] %v293
                %v295 = vld [vmem:[%s181 + $0x1f0] sm:$0xff]
                %296 = vst [vmem:[%s182 + $0x1c0] sm:$0xff] %v295
                %v297 = vld [vmem:[%s181 + $0x1f8] sm:$0xff]
                %298 = vst [vmem:[%s182 + $0x1c8] sm:$0xff] %v297
                %v299 = vld [vmem:[%s181 + $0x200] sm:$0xff]
                %300 = vst [vmem:[%s182 + $0x1d0] sm:$0xff] %v299
                %v301 = vld [vmem:[%s181 + $0x208] sm:$0xff]
                %302 = vst [vmem:[%s182 + $0x1d8] sm:$0xff] %v301
                %v303 = vld [vmem:[%s181 + $0x210] sm:$0xff]
                %304 = vst [vmem:[%s182 + $0x1e0] sm:$0xff] %v303
                %v305 = vld [vmem:[%s181 + $0x218] sm:$0xff]
                %306 = vst [vmem:[%s182 + $0x1e8] sm:$0xff] %v305
                %v307 = vld [vmem:[%s181 + $0x220] sm:$0xff]
                %308 = vst [vmem:[%s182 + $0x1f0] sm:$0xff] %v307
                %v309 = vld [vmem:[%s181 + $0x228] sm:$0xff]
                %310 = vst [vmem:[%s182 + $0x1f8] sm:$0xff] %v309
                %s311 = sadd.s32 1, %s180
                %p312 = scmp.ge.s32.totalorder %s311, %s173
                %s313 = scalar_select %p312, 0, %s311
                %s314 = smul.u32 %s313, 128
                %s315 = smul.u32 %s313, 128
                %s316 = scalar_lea.vmem %s163, %s314
                %s317 = scalar_lea.vmem %s151, %s315 [#allocation4]
              $region45: #{downsample.1} parent=39 // loop_footer
                %s177 = sadd.s32 %s175, 1
              $region46: #{downsample.1} parent=39 // loop_footer_branch
                %174 = sbr.rel target = $region42
              $region47: #{downsample.1} parent=39 // loop_exit
                _
              %s318 = sshrl.u32 %s164, 4
              %s319 = sand.u32 %s164, 15
              %s320 = smul.u32 %s318, 16
              %s321 = smul.u32 8, %s320
              %s322 = scalar_lea.vmem %s163, %s321
              %s323 = smul.u32 8, %s320
              %s324 = scalar_lea.vmem %s151, %s323 [#allocation4]
              // While loop
              $region48: #{downsample.1} parent=39 // loop_pre_header
                _
              $region49: #{downsample.1} parent=39 // loop_header
                %s326 = sphi 0, %s328
                %p327 = scmp.ge.s32.totalorder %s326, %s319
                %s331 = sphi 0, %s344
                %s332 = sphi %s322, %s347
                %s333 = sphi %s324, %s348
              $region50: #{downsample.1} parent=39 // loop_header_branch
                %330 = sbr.rel (%p327) target = $region54
              $region51: #{downsample.1} parent=39 // loop_body
                %v334 = vld [vmem:[%s332] sm:$0xff]
                %335 = vst [vmem:[%s333] sm:$0xff] %v334
                %v336 = vld [vmem:[%s332 + $0x90] sm:$0xff]
                %337 = vst [vmem:[%s333 + $0x80] sm:$0xff] %v336
                %v338 = vld [vmem:[%s332 + $0x120] sm:$0xff]
                %339 = vst [vmem:[%s333 + $0x100] sm:$0xff] %v338
                %v340 = vld [vmem:[%s332 + $0x1b0] sm:$0xff]
                %341 = vst [vmem:[%s333 + $0x180] sm:$0xff] %v340
                %s342 = sadd.s32 1, %s331
                %p343 = scmp.ge.s32.totalorder %s342, %s319
                %s344 = scalar_select %p343, 0, %s342
                %s345 = smul.u32 %s344, 8
                %s346 = smul.u32 %s344, 8
                %s347 = scalar_lea.vmem %s322, %s345
                %s348 = scalar_lea.vmem %s324, %s346 [#allocation4]
              $region52: #{downsample.1} parent=39 // loop_footer
                %s328 = sadd.s32 %s326, 1
              $region53: #{downsample.1} parent=39 // loop_footer_branch
                %325 = sbr.rel target = $region49
              $region54: #{downsample.1} parent=39 // loop_exit
                _
            $region40: #{downsample.1} parent=31 // pred_fallthru
              _
          $region32: #{downsample.1} parent=27 // pred_fallthru
            _
          %529 = vnop
        $region28: #{downsample.1} parent=23 // pred_fallthru
          _
      $region24: #{downsample.1} parent=5 // pred_fallthru
        _
      %p530 = scmp.le.s32.totalorder 1, %s10
      %p531 = scmp.lt.s32.totalorder %s10, 3
      %p532 = pnand %p530, %p531
      %p533 = pneg %p532
      // Predicated region
      $region77: #{downsample.1} parent=5 // pred_check
        _
      $region78: #{downsample.1} parent=5 // pred_check_branch
        %535 = sbr.rel (%p532) target = $region80
      $region79: #{downsample.1} parent=5 // pred_region
        %s536 = ssub.s32 %s10, 1
        %s537 = sand.u32 %s37, 1
        %s538 = sand.u32 %s37, 1
        %s539 = smul.addr %s538, 512
        %s540 = scalar_lea.vmem [#allocation4], %s539
        // Predicated region
        $region81: #{downsample.1} parent=79 // pred_check
          %p541 = pneg %p50
        $region82: #{downsample.1} parent=79 // pred_check_branch
          %543 = sbr.rel (%p541) target = $region84
        $region83: #{downsample.1} parent=79 // pred_region
          _
        $region84: #{downsample.1} parent=79 // pred_fallthru
          _
        %s544 = sand.u32 %s37, 1
        %s545 = sand.u32 %s37, 1
        %s546 = smul.addr %s545, 512
        %s547 = scalar_lea.vmem [#allocation4], %s546
        %p548 = pneg %p50
        %p549 = pneg %p47
        %p550 = pneg %p71
        %p551 = pneg %p68
        %p552 = pneg %p92
        %p553 = pneg %p89
        %p554 = pneg %p120
        %p555 = pneg %p117
        %s556 = smul.u32 8, %s20
        %p557 = scmp.lt.s32.totalorder %s19, 1
        %s558 = scalar_select %p557, %s19, 1
        %p559 = scmp.lt.s32.totalorder %s556, 7
        %s560 = scalar_select %p559, %s556, 7
        %s561 = smul.addr %s558, 8
        %s562 = sadd.s32 %s560, %s561
        %s563 = smul.addr %s562, 8
        %s564 = scalar_lea.vmem %s4, %s563
        %s565 = smul.u32 8, %s20
        %s566 = ssub.s32 9, %s565
        %p567 = scmp.lt.s32.totalorder %s566, 8
        %s568 = scalar_select %p567, %s566, 8
        %s569 = smul.u32 512, %s568
        %s570 = smul.u32 %s569, 2
        %s571 = smul.u32 8, %s20
        %p572 = scmp.lt.s32.totalorder %s19, 1
        %s573 = scalar_select %p572, %s19, 1
        %p574 = scmp.lt.s32.totalorder %s571, 7
        %s575 = scalar_select %p574, %s571, 7
        %s576 = smul.addr %s573, 8
        %s577 = sadd.s32 %s575, %s576
        %s578 = smul.addr %s577, 8
        %s579 = scalar_lea.vmem %s4, %s578
        %s580 = smul.u32 8, %s20
        %s581 = sadd.s32 %s20, 1
        %s582 = smul.u32 %s581, 8
        %s583 = smul.u32 %s582, 16
        %s584 = smul.u32 %s19, 576
        %s585 = sadd.s32 %s583, %s584
        %s586 = scalar_lea.vmem %s1, %s585
        %p588 = scmp.lt.u32.totalorder 9, 8
        %p589 = pneg %p588
        // Predicated region
        $region85: #{downsample.1} parent=79 // pred_check
          _
        $region86: #{downsample.1} parent=79 // pred_check_branch
          %591 = sbr.rel (%p588) target = $region88
        $region87: #{downsample.1} parent=79 // pred_region
          %s608 = sand.u32 9, 7
          %p609 = scmp.eq.s32.totalorder %s608, 0
          %p610 = pneg %p609
          // Predicated region
          $region100: #{downsample.1} parent=87 // pred_check
            _
          $region101: #{downsample.1} parent=87 // pred_check_branch
            %612 = sbr.rel (%p609) target = $region103
          $region102: #{downsample.1} parent=87 // pred_region
            %s613 = sand.u32 9, 7
            %s614 = ssub.s32 9, %s613
            %s615 = scalar_lea.vmem %s586, %s614
            %s616 = ssub.s32 9, %s613
            %s617 = scalar_lea.vmem [#allocation2], %s616
            loop: start=0, step=1, limit=1
            $region104: #{downsample.1} parent=102 // loop_pre_header
              _
            $region105: #{downsample.1} parent=102 // loop_header
              %s619 = sphi 0, %s623
              %p620 = scmp.ge.s32.totalorder %s619, 1
              %s624 = sphi %s586, %s586
              %s625 = sphi [#allocation2], [#allocation2]
            $region106: #{downsample.1} parent=102 // loop_header_branch
              %622 = sbr.rel (%p620) target = $region110
            $region107: #{downsample.1} parent=102 // loop_body
              %v626 = vld [vmem:[%s624] sm:$0xff]
              %627 = vst [vmem:[%s625] sm:$0xff] %v626
              %v628 = vld [vmem:[%s624 + $0x90] sm:$0xff]
              %629 = vst [vmem:[%s625 + $0x10] sm:$0xff] %v628
            $region108: #{downsample.1} parent=102 // loop_footer
              %s623 = sadd.s32 1, %s619
            $region109: #{downsample.1} parent=102 // loop_footer_branch
              %618 = sbr.rel target = $region105
            $region110: #{downsample.1} parent=102 // loop_exit
              _
            %s630 = sshllo.u32 0, %s613
            loop: start=0, step=1, limit=1
            $region111: #{downsample.1} parent=102 // loop_pre_header
              _
            $region112: #{downsample.1} parent=102 // loop_header
              %s632 = sphi 0, %s636
              %p633 = scmp.ge.s32.totalorder %s632, 1
              %s637 = sphi %s615, %s615
              %s638 = sphi %s617, %s617
            $region113: #{downsample.1} parent=102 // loop_header_branch
              %635 = sbr.rel (%p633) target = $region117
            $region114: #{downsample.1} parent=102 // loop_body
              %v639 = vld [vmem:[%s637] sm:%s630]
              %640 = vst [vmem:[%s638] sm:%s630] %v639
              %v641 = vld [vmem:[%s637 + $0x90] sm:%s630]
              %642 = vst [vmem:[%s638 + $0x10] sm:%s630] %v641
            $region115: #{downsample.1} parent=102 // loop_footer
              %s636 = sadd.s32 1, %s632
            $region116: #{downsample.1} parent=102 // loop_footer_branch
              %631 = sbr.rel target = $region112
            $region117: #{downsample.1} parent=102 // loop_exit
              _
          $region103: #{downsample.1} parent=87 // pred_fallthru
            _
        $region88: #{downsample.1} parent=79 // pred_fallthru
          _
        // Predicated region
        $region89: #{downsample.1} parent=79 // pred_check
          %p592 = pneg %p588
        $region90: #{downsample.1} parent=79 // pred_check_branch
          %594 = sbr.rel (%p592) target = $region92
        $region91: #{downsample.1} parent=79 // pred_region
          %s595 = sshllo.u32 0, 9
          loop: start=0, step=1, limit=1
          $region93: #{downsample.1} parent=91 // loop_pre_header
            _
          $region94: #{downsample.1} parent=91 // loop_header
            %s597 = sphi 0, %s601
            %p598 = scmp.ge.s32.totalorder %s597, 1
            %s602 = sphi %s586, %s586
            %s603 = sphi [#allocation2], [#allocation2]
          $region95: #{downsample.1} parent=91 // loop_header_branch
            %600 = sbr.rel (%p598) target = $region99
          $region96: #{downsample.1} parent=91 // loop_body
            %v604 = vld [vmem:[%s602] sm:%s595]
            %605 = vst [vmem:[%s603] sm:%s595] %v604
            %v606 = vld [vmem:[%s602 + $0x90] sm:%s595]
            %607 = vst [vmem:[%s603 + $0x10] sm:%s595] %v606
          $region97: #{downsample.1} parent=91 // loop_footer
            %s601 = sadd.s32 1, %s597
          $region98: #{downsample.1} parent=91 // loop_footer_branch
            %596 = sbr.rel target = $region94
          $region99: #{downsample.1} parent=91 // loop_exit
            _
        $region92: #{downsample.1} parent=79 // pred_fallthru
          _
        // Predicated region
        $region118: #{downsample.1} parent=79 // pred_check
          _
        $region119: #{downsample.1} parent=79 // pred_check_branch
          %645 = sbr.rel (0) target = $region121
        $region120: #{downsample.1} parent=79 // pred_region
          %646 = vsyncadd [#allocation3], 288
        $region121: #{downsample.1} parent=79 // pred_fallthru
          _
        %v647 = vld [vmem:[%s540] sm:$0xff]
        %v648 = vld [vmem:[%s540 + $0x10] sm:$0xff]
        %v649 = vld [vmem:[%s540 + $0x20] sm:$0xff]
        %v650 = vld [vmem:[%s540 + $0x30] sm:$0xff]
        %v651 = vld [vmem:[%s540 + $0x40] sm:$0xff]
        %v652 = vld [vmem:[%s540 + $0x50] sm:$0xff]
        %v653 = vld [vmem:[%s540 + $0x60] sm:$0xff]
        %v654 = vld [vmem:[%s540 + $0x70] sm:$0xff]
        %v655 = vld [vmem:[%s2] sm:$0xf]
        %s656 = scalar_lea.vmem %s540, 128 [#allocation4]
        %v657 = vld [vmem:[%s656] sm:$0xff]
        %v658 = vld [vmem:[%s656 + $0x10] sm:$0xff]
        %v659 = vld [vmem:[%s656 + $0x20] sm:$0xff]
        %v660 = vld [vmem:[%s656 + $0x30] sm:$0xff]
        %v661 = vld [vmem:[%s656 + $0x40] sm:$0xff]
        %v662 = vld [vmem:[%s656 + $0x50] sm:$0xff]
        %v663 = vld [vmem:[%s656 + $0x60] sm:$0xff]
        %v664 = vld [vmem:[%s656 + $0x70] sm:$0xff]
        %s665 = scalar_lea.vmem %s2, 4
        %v666 = vld [vmem:[%s665] sm:$0xf]
        %vm667 = vcmask 31744
        %v669 = vsel %vm667, %v657, 0
        %v672 = vsel %vm667, %v658, 0
        %v675 = vsel %vm667, %v659, 0
        %v678 = vsel %vm667, %v660, 0
        %v681 = vsel %vm667, %v661, 0
        %v684 = vsel %vm667, %v662, 0
        %v687 = vsel %vm667, %v663, 0
        %v690 = vsel %vm667, %v664, 0
        %vm692 = vcmask 1043456
        %v694 = vsel %vm692, %v666, 0
        %696 = vmatprep.subr.mxu0 0.0
        %697 = vmatpush1.msra.mxu0 %v694
        %698 = vmatprep.subr.mxu0 0.0
        %699 = vmatpush1.msra.mxu0 0.0
        %700 = vmatprep.subr.mxu0 0.0
        %701 = vmatpush1.msra.mxu0 0.0
        %702 = vmatprep.subr.mxu0 0.0
        %703 = vmatpush1.msra.mxu0 0.0
        %704 = vmatprep.subr.mxu0 0.0
        %705 = vmatpush1.msra.mxu0 0.0
        %706 = vmatprep.subr.mxu0 0.0
        %707 = vmatpush1.msra.mxu0 0.0
        %708 = vmatprep.subr.mxu0 0.0
        %709 = vmatpush1.msra.mxu0 0.0
        %710 = vmatprep.subr.mxu0 0.0
        %711 = vmatpush1.msra.mxu0 0.0
        %712 = vmatprep.subr.mxu0 0.0
        %713 = vmatpush1.msra.mxu0 0.0
        %714 = vmatprep.subr.mxu0 0.0
        %715 = vmatpush1.msra.mxu0 0.0
        %716 = vmatprep.subr.mxu0 0.0
        %717 = vmatpush1.msra.mxu0 0.0
        %718 = vmatprep.subr.mxu0 0.0
        %719 = vmatpush1.msra.mxu0 0.0
        %720 = vmatprep.subr.mxu0 0.0
        %721 = vmatpush1.msra.mxu0 0.0
        %722 = vmatprep.subr.mxu0 0.0
        %723 = vmatpush1.msra.mxu0 0.0
        %724 = vmatprep.subr.mxu0 0.0
        %725 = vmatpush1.msra.mxu0 0.0
        %726 = vmatprep.subr.mxu0 0.0
        %727 = vmatpush1.msra.mxu0 0.0
        %728 = vmatprep.subr.mxu0 0.0
        %729 = vmatpush1.msra.mxu0 0.0
        %730 = vmatprep.subr.mxu0 0.0
        %731 = vmatpush1.msra.mxu0 0.0
        %732 = vmatprep.subr.mxu0 0.0
        %733 = vmatpush1.msra.mxu0 0.0
        %734 = vmatprep.subr.mxu0 0.0
        %735 = vmatpush1.msra.mxu0 0.0
        %736 = vmatprep.subr.mxu0 0.0
        %737 = vmatpush1.msra.mxu0 0.0
        %738 = vmatprep.subr.mxu0 0.0
        %739 = vmatpush1.msra.mxu0 0.0
        %740 = vmatprep.subr.mxu0 0.0
        %741 = vmatpush1.msra.mxu0 0.0
        %742 = vmatprep.subr.mxu0 0.0
        %743 = vmatpush1.msra.mxu0 0.0
        %744 = vmatprep.subr.mxu0 0.0
        %745 = vmatpush1.msra.mxu0 0.0
        %746 = vmatprep.subr.mxu0 0.0
        %747 = vmatpush1.msra.mxu0 0.0
        %748 = vmatprep.subr.mxu0 0.0
        %749 = vmatpush1.msra.mxu0 0.0
        %750 = vmatprep.subr.mxu0 0.0
        %751 = vmatpush1.msra.mxu0 0.0
        %752 = vmatprep.subr.mxu0 0.0
        %753 = vmatpush1.msra.mxu0 0.0
        %754 = vmatprep.subr.mxu0 0.0
        %755 = vmatpush1.msra.mxu0 0.0
        %756 = vmatprep.subr.mxu0 0.0
        %757 = vmatpush1.msra.mxu0 0.0
        %758 = vmatprep.subr.mxu0 0.0
        %759 = vmatpush1.msra.mxu0 0.0
        %760 = vmatprep.mubr.f32.mxu0 0.0
        %761 = vmatmul.mubr.f32.gmra.mrb[0].mxu0 %v669
        %v762 = vpop.f32.mrb[0].mxu0
        %v763 = vadd.f32 0.0, %v762
        %v764 = vpop.f32.mrb[0].mxu0
        %765 = vmatprep.mubr.f32.mxu0 0.0
        %766 = vmatmul.mubr.f32.gmra.mrb[0].mxu0 %v672
        %v767 = vpop.f32.mrb[0].mxu0
        %v768 = vadd.f32 0.0, %v767
        %v769 = vpop.f32.mrb[0].mxu0
        %770 = vmatprep.mubr.f32.mxu0 0.0
        %771 = vmatmul.mubr.f32.gmra.mrb[0].mxu0 %v675
        %v772 = vpop.f32.mrb[0].mxu0
        %v773 = vadd.f32 0.0, %v772
        %v774 = vpop.f32.mrb[0].mxu0
        %775 = vmatprep.mubr.f32.mxu0 0.0
        %776 = vmatmul.mubr.f32.gmra.mrb[0].mxu0 %v678
        %v777 = vpop.f32.mrb[0].mxu0
        %v778 = vadd.f32 0.0, %v777
        %v779 = vpop.f32.mrb[0].mxu0
        %780 = vmatprep.mubr.f32.mxu0 0.0
        %781 = vmatmul.mubr.f32.gmra.mrb[0].mxu0 %v681
        %v782 = vpop.f32.mrb[0].mxu0
        %v783 = vadd.f32 0.0, %v782
        %v784 = vpop.f32.mrb[0].mxu0
        %785 = vmatprep.mubr.f32.mxu0 0.0
        %786 = vmatmul.mubr.f32.gmra.mrb[0].mxu0 %v684
        %v787 = vpop.f32.mrb[0].mxu0
        %v788 = vadd.f32 0.0, %v787
        %v789 = vpop.f32.mrb[0].mxu0
        %790 = vmatprep.mubr.f32.mxu0 0.0
        %791 = vmatmul.mubr.f32.gmra.mrb[0].mxu0 %v687
        %v792 = vpop.f32.mrb[0].mxu0
        %v793 = vadd.f32 0.0, %v792
        %v794 = vpop.f32.mrb[0].mxu0
        %795 = vmatprep.mubr.f32.mxu0 0.0
        %796 = vmatmul.mubr.f32.gmra.mrb[0].mxu0 %v690
        %v797 = vpop.f32.mrb[0].mxu0
        %v798 = vadd.f32 0.0, %v797
        %v799 = vpop.f32.mrb[0].mxu0
        %800 = vdwg.mxu0
        %v802 = vsel %vm667, %v647, 0
        %v805 = vsel %vm667, %v648, 0
        %v808 = vsel %vm667, %v649, 0
        %v811 = vsel %vm667, %v650, 0
        %v814 = vsel %vm667, %v651, 0
        %v817 = vsel %vm667, %v652, 0
        %v820 = vsel %vm667, %v653, 0
        %v823 = vsel %vm667, %v654, 0
        %v826 = vsel %vm692, %v655, 0
        %828 = vmatprep.subr.mxu0 0.0
        %829 = vmatpush1.msra.mxu0 %v826
        %830 = vmatprep.subr.mxu0 0.0
        %831 = vmatpush1.msra.mxu0 0.0
        %832 = vmatprep.subr.mxu0 0.0
        %833 = vmatpush1.msra.mxu0 0.0
        %834 = vmatprep.subr.mxu0 0.0
        %835 = vmatpush1.msra.mxu0 0.0
        %836 = vmatprep.subr.mxu0 0.0
        %837 = vmatpush1.msra.mxu0 0.0
        %838 = vmatprep.subr.mxu0 0.0
        %839 = vmatpush1.msra.mxu0 0.0
        %840 = vmatprep.subr.mxu0 0.0
        %841 = vmatpush1.msra.mxu0 0.0
        %842 = vmatprep.subr.mxu0 0.0
        %843 = vmatpush1.msra.mxu0 0.0
        %844 = vmatprep.subr.mxu0 0.0
        %845 = vmatpush1.msra.mxu0 0.0
        %846 = vmatprep.subr.mxu0 0.0
        %847 = vmatpush1.msra.mxu0 0.0
        %848 = vmatprep.subr.mxu0 0.0
        %849 = vmatpush1.msra.mxu0 0.0
        %850 = vmatprep.subr.mxu0 0.0
        %851 = vmatpush1.msra.mxu0 0.0
        %852 = vmatprep.subr.mxu0 0.0
        %853 = vmatpush1.msra.mxu0 0.0
        %854 = vmatprep.subr.mxu0 0.0
        %855 = vmatpush1.msra.mxu0 0.0
        %856 = vmatprep.subr.mxu0 0.0
        %857 = vmatpush1.msra.mxu0 0.0
        %858 = vmatprep.subr.mxu0 0.0
        %859 = vmatpush1.msra.mxu0 0.0
        %860 = vmatprep.subr.mxu0 0.0
        %861 = vmatpush1.msra.mxu0 0.0
        %862 = vmatprep.subr.mxu0 0.0
        %863 = vmatpush1.msra.mxu0 0.0
        %864 = vmatprep.subr.mxu0 0.0
        %865 = vmatpush1.msra.mxu0 0.0
        %866 = vmatprep.subr.mxu0 0.0
        %867 = vmatpush1.msra.mxu0 0.0
        %868 = vmatprep.subr.mxu0 0.0
        %869 = vmatpush1.msra.mxu0 0.0
        %870 = vmatprep.subr.mxu0 0.0
        %871 = vmatpush1.msra.mxu0 0.0
        %872 = vmatprep.subr.mxu0 0.0
        %873 = vmatpush1.msra.mxu0 0.0
        %874 = vmatprep.subr.mxu0 0.0
        %875 = vmatpush1.msra.mxu0 0.0
        %876 = vmatprep.subr.mxu0 0.0
        %877 = vmatpush1.msra.mxu0 0.0
        %878 = vmatprep.subr.mxu0 0.0
        %879 = vmatpush1.msra.mxu0 0.0
        %880 = vmatprep.subr.mxu0 0.0
        %881 = vmatpush1.msra.mxu0 0.0
        %882 = vmatprep.subr.mxu0 0.0
        %883 = vmatpush1.msra.mxu0 0.0
        %884 = vmatprep.subr.mxu0 0.0
        %885 = vmatpush1.msra.mxu0 0.0
        %886 = vmatprep.subr.mxu0 0.0
        %887 = vmatpush1.msra.mxu0 0.0
        %888 = vmatprep.subr.mxu0 0.0
        %889 = vmatpush1.msra.mxu0 0.0
        %890 = vmatprep.subr.mxu0 0.0
        %891 = vmatpush1.msra.mxu0 0.0
        %892 = vmatprep.mubr.f32.mxu0 0.0
        %893 = vmatmul.mubr.f32.gmra.mrb[0].mxu0 %v802
        %v894 = vpop.f32.mrb[0].mxu0
        %v895 = vadd.f32 %v763, %v894
        %v896 = vpop.f32.mrb[0].mxu0
        %897 = vmatprep.mubr.f32.mxu0 0.0
        %898 = vmatmul.mubr.f32.gmra.mrb[0].mxu0 %v805
        %v899 = vpop.f32.mrb[0].mxu0
        %v900 = vadd.f32 %v768, %v899
        %v901 = vpop.f32.mrb[0].mxu0
        %902 = vmatprep.mubr.f32.mxu0 0.0
        %903 = vmatmul.mubr.f32.gmra.mrb[0].mxu0 %v808
        %v904 = vpop.f32.mrb[0].mxu0
        %v905 = vadd.f32 %v773, %v904
        %v906 = vpop.f32.mrb[0].mxu0
        %907 = vmatprep.mubr.f32.mxu0 0.0
        %908 = vmatmul.mubr.f32.gmra.mrb[0].mxu0 %v811
        %v909 = vpop.f32.mrb[0].mxu0
        %v910 = vadd.f32 %v778, %v909
        %v911 = vpop.f32.mrb[0].mxu0
        %912 = vmatprep.mubr.f32.mxu0 0.0
        %913 = vmatmul.mubr.f32.gmra.mrb[0].mxu0 %v814
        %v914 = vpop.f32.mrb[0].mxu0
        %v915 = vadd.f32 %v783, %v914
        %v916 = vpop.f32.mrb[0].mxu0
        %917 = vmatprep.mubr.f32.mxu0 0.0
        %918 = vmatmul.mubr.f32.gmra.mrb[0].mxu0 %v817
        %v919 = vpop.f32.mrb[0].mxu0
        %v920 = vadd.f32 %v788, %v919
        %v921 = vpop.f32.mrb[0].mxu0
        %922 = vmatprep.mubr.f32.mxu0 0.0
        %923 = vmatmul.mubr.f32.gmra.mrb[0].mxu0 %v820
        %v924 = vpop.f32.mrb[0].mxu0
        %v925 = vadd.f32 %v793, %v924
        %v926 = vpop.f32.mrb[0].mxu0
        %927 = vmatprep.mubr.f32.mxu0 0.0
        %928 = vmatmul.mubr.f32.gmra.mrb[0].mxu0 %v823
        %v929 = vpop.f32.mrb[0].mxu0
        %v930 = vadd.f32 %v798, %v929
        %v931 = vpop.f32.mrb[0].mxu0
        %932 = vdwg.mxu0
        %v933 = vld [vmem:[%s540 + $0x1] sm:$0xff]
        %v934 = vld [vmem:[%s540 + $0x11] sm:$0xff]
        %v935 = vld [vmem:[%s540 + $0x21] sm:$0xff]
        %v936 = vld [vmem:[%s540 + $0x31] sm:$0xff]
        %v937 = vld [vmem:[%s540 + $0x41] sm:$0xff]
        %v938 = vld [vmem:[%s540 + $0x51] sm:$0xff]
        %v939 = vld [vmem:[%s540 + $0x61] sm:$0xff]
        %v940 = vld [vmem:[%s540 + $0x71] sm:$0xff]
        %s941 = scalar_lea.vmem %s2, 8
        %v942 = vld [vmem:[%s941] sm:$0xf]
        %v944 = vsel %vm667, %v933, 0
        %v947 = vsel %vm667, %v934, 0
        %v950 = vsel %vm667, %v935, 0
        %v953 = vsel %vm667, %v936, 0
        %v956 = vsel %vm667, %v937, 0
        %v959 = vsel %vm667, %v938, 0
        %v962 = vsel %vm667, %v939, 0
        %v965 = vsel %vm667, %v940, 0
        %v968 = vsel %vm692, %v942, 0
        %970 = vmatprep.subr.mxu0 0.0
        %971 = vmatpush1.msra.mxu0 %v968
        %972 = vmatprep.subr.mxu0 0.0
        %973 = vmatpush1.msra.mxu0 0.0
        %974 = vmatprep.subr.mxu0 0.0
        %975 = vmatpush1.msra.mxu0 0.0
        %976 = vmatprep.subr.mxu0 0.0
        %977 = vmatpush1.msra.mxu0 0.0
        %978 = vmatprep.subr.mxu0 0.0
        %979 = vmatpush1.msra.mxu0 0.0
        %980 = vmatprep.subr.mxu0 0.0
        %981 = vmatpush1.msra.mxu0 0.0
        %982 = vmatprep.subr.mxu0 0.0
        %983 = vmatpush1.msra.mxu0 0.0
        %984 = vmatprep.subr.mxu0 0.0
        %985 = vmatpush1.msra.mxu0 0.0
        %986 = vmatprep.subr.mxu0 0.0
        %987 = vmatpush1.msra.mxu0 0.0
        %988 = vmatprep.subr.mxu0 0.0
        %989 = vmatpush1.msra.mxu0 0.0
        %990 = vmatprep.subr.mxu0 0.0
        %991 = vmatpush1.msra.mxu0 0.0
        %992 = vmatprep.subr.mxu0 0.0
        %993 = vmatpush1.msra.mxu0 0.0
        %994 = vmatprep.subr.mxu0 0.0
        %995 = vmatpush1.msra.mxu0 0.0
        %996 = vmatprep.subr.mxu0 0.0
        %997 = vmatpush1.msra.mxu0 0.0
        %998 = vmatprep.subr.mxu0 0.0
        %999 = vmatpush1.msra.mxu0 0.0
        %1000 = vmatprep.subr.mxu0 0.0
        %1001 = vmatpush1.msra.mxu0 0.0
        %1002 = vmatprep.subr.mxu0 0.0
        %1003 = vmatpush1.msra.mxu0 0.0
        %1004 = vmatprep.subr.mxu0 0.0
        %1005 = vmatpush1.msra.mxu0 0.0
        %1006 = vmatprep.subr.mxu0 0.0
        %1007 = vmatpush1.msra.mxu0 0.0
        %1008 = vmatprep.subr.mxu0 0.0
        %1009 = vmatpush1.msra.mxu0 0.0
        %1010 = vmatprep.subr.mxu0 0.0
        %1011 = vmatpush1.msra.mxu0 0.0
        %1012 = vmatprep.subr.mxu0 0.0
        %1013 = vmatpush1.msra.mxu0 0.0
        %1014 = vmatprep.subr.mxu0 0.0
        %1015 = vmatpush1.msra.mxu0 0.0
        %1016 = vmatprep.subr.mxu0 0.0
        %1017 = vmatpush1.msra.mxu0 0.0
        %1018 = vmatprep.subr.mxu0 0.0
        %1019 = vmatpush1.msra.mxu0 0.0
        %1020 = vmatprep.subr.mxu0 0.0
        %1021 = vmatpush1.msra.mxu0 0.0
        %1022 = vmatprep.subr.mxu0 0.0
        %1023 = vmatpush1.msra.mxu0 0.0
        %1024 = vmatprep.subr.mxu0 0.0
        %1025 = vmatpush1.msra.mxu0 0.0
        %1026 = vmatprep.subr.mxu0 0.0
        %1027 = vmatpush1.msra.mxu0 0.0
        %1028 = vmatprep.subr.mxu0 0.0
        %1029 = vmatpush1.msra.mxu0 0.0
        %1030 = vmatprep.subr.mxu0 0.0
        %1031 = vmatpush1.msra.mxu0 0.0
        %1032 = vmatprep.subr.mxu0 0.0
        %1033 = vmatpush1.msra.mxu0 0.0
        %1034 = vmatprep.mubr.f32.mxu0 0.0
        %1035 = vmatmul.mubr.f32.gmra.mrb[0].mxu0 %v944
        %v1036 = vpop.f32.mrb[0].mxu0
        %v1037 = vadd.f32 0.0, %v1036
        %v1038 = vpop.f32.mrb[0].mxu0
        %1039 = vmatprep.mubr.f32.mxu0 0.0
        %1040 = vmatmul.mubr.f32.gmra.mrb[0].mxu0 %v947
        %v1041 = vpop.f32.mrb[0].mxu0
        %v1042 = vadd.f32 0.0, %v1041
        %v1043 = vpop.f32.mrb[0].mxu0
        %1044 = vmatprep.mubr.f32.mxu0 0.0
        %1045 = vmatmul.mubr.f32.gmra.mrb[0].mxu0 %v950
        %v1046 = vpop.f32.mrb[0].mxu0
        %v1047 = vadd.f32 0.0, %v1046
        %v1048 = vpop.f32.mrb[0].mxu0
        %1049 = vmatprep.mubr.f32.mxu0 0.0
        %1050 = vmatmul.mubr.f32.gmra.mrb[0].mxu0 %v953
        %v1051 = vpop.f32.mrb[0].mxu0
        %v1052 = vadd.f32 0.0, %v1051
        %v1053 = vpop.f32.mrb[0].mxu0
        %1054 = vmatprep.mubr.f32.mxu0 0.0
        %1055 = vmatmul.mubr.f32.gmra.mrb[0].mxu0 %v956
        %v1056 = vpop.f32.mrb[0].mxu0
        %v1057 = vadd.f32 0.0, %v1056
        %v1058 = vpop.f32.mrb[0].mxu0
        %1059 = vmatprep.mubr.f32.mxu0 0.0
        %1060 = vmatmul.mubr.f32.gmra.mrb[0].mxu0 %v959
        %v1061 = vpop.f32.mrb[0].mxu0
        %v1062 = vadd.f32 0.0, %v1061
        %v1063 = vpop.f32.mrb[0].mxu0
        %1064 = vmatprep.mubr.f32.mxu0 0.0
        %1065 = vmatmul.mubr.f32.gmra.mrb[0].mxu0 %v962
        %v1066 = vpop.f32.mrb[0].mxu0
        %v1067 = vadd.f32 0.0, %v1066
        %v1068 = vpop.f32.mrb[0].mxu0
        %1069 = vmatprep.mubr.f32.mxu0 0.0
        %1070 = vmatmul.mubr.f32.gmra.mrb[0].mxu0 %v965
        %v1071 = vpop.f32.mrb[0].mxu0
        %v1072 = vadd.f32 0.0, %v1071
        %v1073 = vpop.f32.mrb[0].mxu0
        %1074 = vdwg.mxu0
        %v1075 = vadd.f32 %v895, %v1037
        %v1076 = vadd.f32 %v900, %v1042
        %v1077 = vadd.f32 %v905, %v1047
        %v1078 = vadd.f32 %v910, %v1052
        %v1079 = vadd.f32 %v915, %v1057
        %v1080 = vadd.f32 %v920, %v1062
        %v1081 = vadd.f32 %v925, %v1067
        %v1082 = vadd.f32 %v930, %v1072
        %s1083 = scalar_lea.vmem %s540, 256 [#allocation4]
        %v1084 = vld [vmem:[%s1083] sm:$0xff]
        %v1085 = vld [vmem:[%s1083 + $0x10] sm:$0xff]
        %v1086 = vld [vmem:[%s1083 + $0x20] sm:$0xff]
        %v1087 = vld [vmem:[%s1083 + $0x30] sm:$0xff]
        %v1088 = vld [vmem:[%s1083 + $0x40] sm:$0xff]
        %v1089 = vld [vmem:[%s1083 + $0x50] sm:$0xff]
        %v1090 = vld [vmem:[%s1083 + $0x60] sm:$0xff]
        %v1091 = vld [vmem:[%s1083 + $0x70] sm:$0xff]
        %s1092 = scalar_lea.vmem %s2, 12
        %v1093 = vld [vmem:[%s1092] sm:$0xf]
        %v1095 = vsel %vm667, %v1084, 0
        %v1098 = vsel %vm667, %v1085, 0
        %v1101 = vsel %vm667, %v1086, 0
        %v1104 = vsel %vm667, %v1087, 0
        %v1107 = vsel %vm667, %v1088, 0
        %v1110 = vsel %vm667, %v1089, 0
        %v1113 = vsel %vm667, %v1090, 0
        %v1116 = vsel %vm667, %v1091, 0
        %v1119 = vsel %vm692, %v1093, 0
        %1121 = vmatprep.subr.mxu0 0.0
        %1122 = vmatpush1.msra.mxu0 %v1119
        %1123 = vmatprep.subr.mxu0 0.0
        %1124 = vmatpush1.msra.mxu0 0.0
        %1125 = vmatprep.subr.mxu0 0.0
        %1126 = vmatpush1.msra.mxu0 0.0
        %1127 = vmatprep.subr.mxu0 0.0
        %1128 = vmatpush1.msra.mxu0 0.0
        %1129 = vmatprep.subr.mxu0 0.0
        %1130 = vmatpush1.msra.mxu0 0.0
        %1131 = vmatprep.subr.mxu0 0.0
        %1132 = vmatpush1.msra.mxu0 0.0
        %1133 = vmatprep.subr.mxu0 0.0
        %1134 = vmatpush1.msra.mxu0 0.0
        %1135 = vmatprep.subr.mxu0 0.0
        %1136 = vmatpush1.msra.mxu0 0.0
        %1137 = vmatprep.subr.mxu0 0.0
        %1138 = vmatpush1.msra.mxu0 0.0
        %1139 = vmatprep.subr.mxu0 0.0
        %1140 = vmatpush1.msra.mxu0 0.0
        %1141 = vmatprep.subr.mxu0 0.0
        %1142 = vmatpush1.msra.mxu0 0.0
        %1143 = vmatprep.subr.mxu0 0.0
        %1144 = vmatpush1.msra.mxu0 0.0
        %1145 = vmatprep.subr.mxu0 0.0
        %1146 = vmatpush1.msra.mxu0 0.0
        %1147 = vmatprep.subr.mxu0 0.0
        %1148 = vmatpush1.msra.mxu0 0.0
        %1149 = vmatprep.subr.mxu0 0.0
        %1150 = vmatpush1.msra.mxu0 0.0
        %1151 = vmatprep.subr.mxu0 0.0
        %1152 = vmatpush1.msra.mxu0 0.0
        %1153 = vmatprep.subr.mxu0 0.0
        %1154 = vmatpush1.msra.mxu0 0.0
        %1155 = vmatprep.subr.mxu0 0.0
        %1156 = vmatpush1.msra.mxu0 0.0
        %1157 = vmatprep.subr.mxu0 0.0
        %1158 = vmatpush1.msra.mxu0 0.0
        %1159 = vmatprep.subr.mxu0 0.0
        %1160 = vmatpush1.msra.mxu0 0.0
        %1161 = vmatprep.subr.mxu0 0.0
        %1162 = vmatpush1.msra.mxu0 0.0
        %1163 = vmatprep.subr.mxu0 0.0
        %1164 = vmatpush1.msra.mxu0 0.0
        %1165 = vmatprep.subr.mxu0 0.0
        %1166 = vmatpush1.msra.mxu0 0.0
        %1167 = vmatprep.subr.mxu0 0.0
        %1168 = vmatpush1.msra.mxu0 0.0
        %1169 = vmatprep.subr.mxu0 0.0
        %1170 = vmatpush1.msra.mxu0 0.0
        %1171 = vmatprep.subr.mxu0 0.0
        %1172 = vmatpush1.msra.mxu0 0.0
        %1173 = vmatprep.subr.mxu0 0.0
        %1174 = vmatpush1.msra.mxu0 0.0
        %1175 = vmatprep.subr.mxu0 0.0
        %1176 = vmatpush1.msra.mxu0 0.0
        %1177 = vmatprep.subr.mxu0 0.0
        %1178 = vmatpush1.msra.mxu0 0.0
        %1179 = vmatprep.subr.mxu0 0.0
        %1180 = vmatpush1.msra.mxu0 0.0
        %1181 = vmatprep.subr.mxu0 0.0
        %1182 = vmatpush1.msra.mxu0 0.0
        %1183 = vmatprep.subr.mxu0 0.0
        %1184 = vmatpush1.msra.mxu0 0.0
        %1185 = vmatprep.mubr.f32.mxu0 0.0
        %1186 = vmatmul.mubr.f32.gmra.mrb[0].mxu0 %v1095
        %v1187 = vpop.f32.mrb[0].mxu0
        %v1188 = vadd.f32 0.0, %v1187
        %v1189 = vpop.f32.mrb[0].mxu0
        %1190 = vmatprep.mubr.f32.mxu0 0.0
        %1191 = vmatmul.mubr.f32.gmra.mrb[0].mxu0 %v1098
        %v1192 = vpop.f32.mrb[0].mxu0
        %v1193 = vadd.f32 0.0, %v1192
        %v1194 = vpop.f32.mrb[0].mxu0
        %1195 = vmatprep.mubr.f32.mxu0 0.0
        %1196 = vmatmul.mubr.f32.gmra.mrb[0].mxu0 %v1101
        %v1197 = vpop.f32.mrb[0].mxu0
        %v1198 = vadd.f32 0.0, %v1197
        %v1199 = vpop.f32.mrb[0].mxu0
        %1200 = vmatprep.mubr.f32.mxu0 0.0
        %1201 = vmatmul.mubr.f32.gmra.mrb[0].mxu0 %v1104
        %v1202 = vpop.f32.mrb[0].mxu0
        %v1203 = vadd.f32 0.0, %v1202
        %v1204 = vpop.f32.mrb[0].mxu0
        %1205 = vmatprep.mubr.f32.mxu0 0.0
        %1206 = vmatmul.mubr.f32.gmra.mrb[0].mxu0 %v1107
        %v1207 = vpop.f32.mrb[0].mxu0
        %v1208 = vadd.f32 0.0, %v1207
        %v1209 = vpop.f32.mrb[0].mxu0
        %1210 = vmatprep.mubr.f32.mxu0 0.0
        %1211 = vmatmul.mubr.f32.gmra.mrb[0].mxu0 %v1110
        %v1212 = vpop.f32.mrb[0].mxu0
        %v1213 = vadd.f32 0.0, %v1212
        %v1214 = vpop.f32.mrb[0].mxu0
        %1215 = vmatprep.mubr.f32.mxu0 0.0
        %1216 = vmatmul.mubr.f32.gmra.mrb[0].mxu0 %v1113
        %v1217 = vpop.f32.mrb[0].mxu0
        %v1218 = vadd.f32 0.0, %v1217
        %v1219 = vpop.f32.mrb[0].mxu0
        %1220 = vmatprep.mubr.f32.mxu0 0.0
        %1221 = vmatmul.mubr.f32.gmra.mrb[0].mxu0 %v1116
        %v1222 = vpop.f32.mrb[0].mxu0
        %v1223 = vadd.f32 0.0, %v1222
        %v1224 = vpop.f32.mrb[0].mxu0
        %1225 = vdwg.mxu0
        %v1226 = vadd.f32 %v1075, %v1188
        %v1227 = vadd.f32 %v1076, %v1193
        %v1228 = vadd.f32 %v1077, %v1198
        %v1229 = vadd.f32 %v1078, %v1203
        %v1230 = vadd.f32 %v1079, %v1208
        %v1231 = vadd.f32 %v1080, %v1213
        %v1232 = vadd.f32 %v1081, %v1218
        %v1233 = vadd.f32 %v1082, %v1223
        %s1234 = scalar_lea.vmem %s540, 384 [#allocation4]
        %v1235 = vld [vmem:[%s1234] sm:$0xff]
        %v1236 = vld [vmem:[%s1234 + $0x10] sm:$0xff]
        %v1237 = vld [vmem:[%s1234 + $0x20] sm:$0xff]
        %v1238 = vld [vmem:[%s1234 + $0x30] sm:$0xff]
        %v1239 = vld [vmem:[%s1234 + $0x40] sm:$0xff]
        %v1240 = vld [vmem:[%s1234 + $0x50] sm:$0xff]
        %v1241 = vld [vmem:[%s1234 + $0x60] sm:$0xff]
        %v1242 = vld [vmem:[%s1234 + $0x70] sm:$0xff]
        %s1243 = scalar_lea.vmem %s2, 16
        %v1244 = vld [vmem:[%s1243] sm:$0xf]
        %v1246 = vsel %vm667, %v1235, 0
        %v1249 = vsel %vm667, %v1236, 0
        %v1252 = vsel %vm667, %v1237, 0
        %v1255 = vsel %vm667, %v1238, 0
        %v1258 = vsel %vm667, %v1239, 0
        %v1261 = vsel %vm667, %v1240, 0
        %v1264 = vsel %vm667, %v1241, 0
        %v1267 = vsel %vm667, %v1242, 0
        %v1270 = vsel %vm692, %v1244, 0
        %1272 = vmatprep.subr.mxu0 0.0
        %1273 = vmatpush1.msra.mxu0 %v1270
        %1274 = vmatprep.subr.mxu0 0.0
        %1275 = vmatpush1.msra.mxu0 0.0
        %1276 = vmatprep.subr.mxu0 0.0
        %1277 = vmatpush1.msra.mxu0 0.0
        %1278 = vmatprep.subr.mxu0 0.0
        %1279 = vmatpush1.msra.mxu0 0.0
        %1280 = vmatprep.subr.mxu0 0.0
        %1281 = vmatpush1.msra.mxu0 0.0
        %1282 = vmatprep.subr.mxu0 0.0
        %1283 = vmatpush1.msra.mxu0 0.0
        %1284 = vmatprep.subr.mxu0 0.0
        %1285 = vmatpush1.msra.mxu0 0.0
        %1286 = vmatprep.subr.mxu0 0.0
        %1287 = vmatpush1.msra.mxu0 0.0
        %1288 = vmatprep.subr.mxu0 0.0
        %1289 = vmatpush1.msra.mxu0 0.0
        %1290 = vmatprep.subr.mxu0 0.0
        %1291 = vmatpush1.msra.mxu0 0.0
        %1292 = vmatprep.subr.mxu0 0.0
        %1293 = vmatpush1.msra.mxu0 0.0
        %1294 = vmatprep.subr.mxu0 0.0
        %1295 = vmatpush1.msra.mxu0 0.0
        %1296 = vmatprep.subr.mxu0 0.0
        %1297 = vmatpush1.msra.mxu0 0.0
        %1298 = vmatprep.subr.mxu0 0.0
        %1299 = vmatpush1.msra.mxu0 0.0
        %1300 = vmatprep.subr.mxu0 0.0
        %1301 = vmatpush1.msra.mxu0 0.0
        %1302 = vmatprep.subr.mxu0 0.0
        %1303 = vmatpush1.msra.mxu0 0.0
        %1304 = vmatprep.subr.mxu0 0.0
        %1305 = vmatpush1.msra.mxu0 0.0
        %1306 = vmatprep.subr.mxu0 0.0
        %1307 = vmatpush1.msra.mxu0 0.0
        %1308 = vmatprep.subr.mxu0 0.0
        %1309 = vmatpush1.msra.mxu0 0.0
        %1310 = vmatprep.subr.mxu0 0.0
        %1311 = vmatpush1.msra.mxu0 0.0
        %1312 = vmatprep.subr.mxu0 0.0
        %1313 = vmatpush1.msra.mxu0 0.0
        %1314 = vmatprep.subr.mxu0 0.0
        %1315 = vmatpush1.msra.mxu0 0.0
        %1316 = vmatprep.subr.mxu0 0.0
        %1317 = vmatpush1.msra.mxu0 0.0
        %1318 = vmatprep.subr.mxu0 0.0
        %1319 = vmatpush1.msra.mxu0 0.0
        %1320 = vmatprep.subr.mxu0 0.0
        %1321 = vmatpush1.msra.mxu0 0.0
        %1322 = vmatprep.subr.mxu0 0.0
        %1323 = vmatpush1.msra.mxu0 0.0
        %1324 = vmatprep.subr.mxu0 0.0
        %1325 = vmatpush1.msra.mxu0 0.0
        %1326 = vmatprep.subr.mxu0 0.0
        %1327 = vmatpush1.msra.mxu0 0.0
        %1328 = vmatprep.subr.mxu0 0.0
        %1329 = vmatpush1.msra.mxu0 0.0
        %1330 = vmatprep.subr.mxu0 0.0
        %1331 = vmatpush1.msra.mxu0 0.0
        %1332 = vmatprep.subr.mxu0 0.0
        %1333 = vmatpush1.msra.mxu0 0.0
        %1334 = vmatprep.subr.mxu0 0.0
        %1335 = vmatpush1.msra.mxu0 0.0
        %1336 = vmatprep.mubr.f32.mxu0 0.0
        %1337 = vmatmul.mubr.f32.gmra.mrb[0].mxu0 %v1246
        %v1338 = vpop.f32.mrb[0].mxu0
        %v1339 = vadd.f32 0.0, %v1338
        %v1340 = vpop.f32.mrb[0].mxu0
        %1341 = vmatprep.mubr.f32.mxu0 0.0
        %1342 = vmatmul.mubr.f32.gmra.mrb[0].mxu0 %v1249
        %v1343 = vpop.f32.mrb[0].mxu0
        %v1344 = vadd.f32 0.0, %v1343
        %v1345 = vpop.f32.mrb[0].mxu0
        %1346 = vmatprep.mubr.f32.mxu0 0.0
        %1347 = vmatmul.mubr.f32.gmra.mrb[0].mxu0 %v1252
        %v1348 = vpop.f32.mrb[0].mxu0
        %v1349 = vadd.f32 0.0, %v1348
        %v1350 = vpop.f32.mrb[0].mxu0
        %1351 = vmatprep.mubr.f32.mxu0 0.0
        %1352 = vmatmul.mubr.f32.gmra.mrb[0].mxu0 %v1255
        %v1353 = vpop.f32.mrb[0].mxu0
        %v1354 = vadd.f32 0.0, %v1353
        %v1355 = vpop.f32.mrb[0].mxu0
        %1356 = vmatprep.mubr.f32.mxu0 0.0
        %1357 = vmatmul.mubr.f32.gmra.mrb[0].mxu0 %v1258
        %v1358 = vpop.f32.mrb[0].mxu0
        %v1359 = vadd.f32 0.0, %v1358
        %v1360 = vpop.f32.mrb[0].mxu0
        %1361 = vmatprep.mubr.f32.mxu0 0.0
        %1362 = vmatmul.mubr.f32.gmra.mrb[0].mxu0 %v1261
        %v1363 = vpop.f32.mrb[0].mxu0
        %v1364 = vadd.f32 0.0, %v1363
        %v1365 = vpop.f32.mrb[0].mxu0
        %1366 = vmatprep.mubr.f32.mxu0 0.0
        %1367 = vmatmul.mubr.f32.gmra.mrb[0].mxu0 %v1264
        %v1368 = vpop.f32.mrb[0].mxu0
        %v1369 = vadd.f32 0.0, %v1368
        %v1370 = vpop.f32.mrb[0].mxu0
        %1371 = vmatprep.mubr.f32.mxu0 0.0
        %1372 = vmatmul.mubr.f32.gmra.mrb[0].mxu0 %v1267
        %v1373 = vpop.f32.mrb[0].mxu0
        %v1374 = vadd.f32 0.0, %v1373
        %v1375 = vpop.f32.mrb[0].mxu0
        %1376 = vdwg.mxu0
        %v1377 = vadd.f32 %v1226, %v1339
        %v1378 = vadd.f32 %v1227, %v1344
        %v1379 = vadd.f32 %v1228, %v1349
        %v1380 = vadd.f32 %v1229, %v1354
        %v1381 = vadd.f32 %v1230, %v1359
        %v1382 = vadd.f32 %v1231, %v1364
        %v1383 = vadd.f32 %v1232, %v1369
        %v1384 = vadd.f32 %v1233, %v1374
        %v1385 = vld [vmem:[%s1083 + $0x1] sm:$0xff]
        %v1386 = vld [vmem:[%s1083 + $0x11] sm:$0xff]
        %v1387 = vld [vmem:[%s1083 + $0x21] sm:$0xff]
        %v1388 = vld [vmem:[%s1083 + $0x31] sm:$0xff]
        %v1389 = vld [vmem:[%s1083 + $0x41] sm:$0xff]
        %v1390 = vld [vmem:[%s1083 + $0x51] sm:$0xff]
        %v1391 = vld [vmem:[%s1083 + $0x61] sm:$0xff]
        %v1392 = vld [vmem:[%s1083 + $0x71] sm:$0xff]
        %s1393 = scalar_lea.vmem %s2, 20
        %v1394 = vld [vmem:[%s1393] sm:$0xf]
        %v1396 = vsel %vm667, %v1385, 0
        %v1399 = vsel %vm667, %v1386, 0
        %v1402 = vsel %vm667, %v1387, 0
        %v1405 = vsel %vm667, %v1388, 0
        %v1408 = vsel %vm667, %v1389, 0
        %v1411 = vsel %vm667, %v1390, 0
        %v1414 = vsel %vm667, %v1391, 0
        %v1417 = vsel %vm667, %v1392, 0
        %v1420 = vsel %vm692, %v1394, 0
        %1422 = vmatprep.subr.mxu0 0.0
        %1423 = vmatpush1.msra.mxu0 %v1420
        %1424 = vmatprep.subr.mxu0 0.0
        %1425 = vmatpush1.msra.mxu0 0.0
        %1426 = vmatprep.subr.mxu0 0.0
        %1427 = vmatpush1.msra.mxu0 0.0
        %1428 = vmatprep.subr.mxu0 0.0
        %1429 = vmatpush1.msra.mxu0 0.0
        %1430 = vmatprep.subr.mxu0 0.0
        %1431 = vmatpush1.msra.mxu0 0.0
        %1432 = vmatprep.subr.mxu0 0.0
        %1433 = vmatpush1.msra.mxu0 0.0
        %1434 = vmatprep.subr.mxu0 0.0
        %1435 = vmatpush1.msra.mxu0 0.0
        %1436 = vmatprep.subr.mxu0 0.0
        %1437 = vmatpush1.msra.mxu0 0.0
        %1438 = vmatprep.subr.mxu0 0.0
        %1439 = vmatpush1.msra.mxu0 0.0
        %1440 = vmatprep.subr.mxu0 0.0
        %1441 = vmatpush1.msra.mxu0 0.0
        %1442 = vmatprep.subr.mxu0 0.0
        %1443 = vmatpush1.msra.mxu0 0.0
        %1444 = vmatprep.subr.mxu0 0.0
        %1445 = vmatpush1.msra.mxu0 0.0
        %1446 = vmatprep.subr.mxu0 0.0
        %1447 = vmatpush1.msra.mxu0 0.0
        %1448 = vmatprep.subr.mxu0 0.0
        %1449 = vmatpush1.msra.mxu0 0.0
        %1450 = vmatprep.subr.mxu0 0.0
        %1451 = vmatpush1.msra.mxu0 0.0
        %1452 = vmatprep.subr.mxu0 0.0
        %1453 = vmatpush1.msra.mxu0 0.0
        %1454 = vmatprep.subr.mxu0 0.0
        %1455 = vmatpush1.msra.mxu0 0.0
        %1456 = vmatprep.subr.mxu0 0.0
        %1457 = vmatpush1.msra.mxu0 0.0
        %1458 = vmatprep.subr.mxu0 0.0
        %1459 = vmatpush1.msra.mxu0 0.0
        %1460 = vmatprep.subr.mxu0 0.0
        %1461 = vmatpush1.msra.mxu0 0.0
        %1462 = vmatprep.subr.mxu0 0.0
        %1463 = vmatpush1.msra.mxu0 0.0
        %1464 = vmatprep.subr.mxu0 0.0
        %1465 = vmatpush1.msra.mxu0 0.0
        %1466 = vmatprep.subr.mxu0 0.0
        %1467 = vmatpush1.msra.mxu0 0.0
        %1468 = vmatprep.subr.mxu0 0.0
        %1469 = vmatpush1.msra.mxu0 0.0
        %1470 = vmatprep.subr.mxu0 0.0
        %1471 = vmatpush1.msra.mxu0 0.0
        %1472 = vmatprep.subr.mxu0 0.0
        %1473 = vmatpush1.msra.mxu0 0.0
        %1474 = vmatprep.subr.mxu0 0.0
        %1475 = vmatpush1.msra.mxu0 0.0
        %1476 = vmatprep.subr.mxu0 0.0
        %1477 = vmatpush1.msra.mxu0 0.0
        %1478 = vmatprep.subr.mxu0 0.0
        %1479 = vmatpush1.msra.mxu0 0.0
        %1480 = vmatprep.subr.mxu0 0.0
        %1481 = vmatpush1.msra.mxu0 0.0
        %1482 = vmatprep.subr.mxu0 0.0
        %1483 = vmatpush1.msra.mxu0 0.0
        %1484 = vmatprep.subr.mxu0 0.0
        %1485 = vmatpush1.msra.mxu0 0.0
        %1486 = vmatprep.mubr.f32.mxu0 0.0
        %1487 = vmatmul.mubr.f32.gmra.mrb[0].mxu0 %v1396
        %v1488 = vpop.f32.mrb[0].mxu0
        %v1489 = vadd.f32 0.0, %v1488
        %v1490 = vpop.f32.mrb[0].mxu0
        %1491 = vmatprep.mubr.f32.mxu0 0.0
        %1492 = vmatmul.mubr.f32.gmra.mrb[0].mxu0 %v1399
        %v1493 = vpop.f32.mrb[0].mxu0
        %v1494 = vadd.f32 0.0, %v1493
        %v1495 = vpop.f32.mrb[0].mxu0
        %1496 = vmatprep.mubr.f32.mxu0 0.0
        %1497 = vmatmul.mubr.f32.gmra.mrb[0].mxu0 %v1402
        %v1498 = vpop.f32.mrb[0].mxu0
        %v1499 = vadd.f32 0.0, %v1498
        %v1500 = vpop.f32.mrb[0].mxu0
        %1501 = vmatprep.mubr.f32.mxu0 0.0
        %1502 = vmatmul.mubr.f32.gmra.mrb[0].mxu0 %v1405
        %v1503 = vpop.f32.mrb[0].mxu0
        %v1504 = vadd.f32 0.0, %v1503
        %v1505 = vpop.f32.mrb[0].mxu0
        %1506 = vmatprep.mubr.f32.mxu0 0.0
        %1507 = vmatmul.mubr.f32.gmra.mrb[0].mxu0 %v1408
        %v1508 = vpop.f32.mrb[0].mxu0
        %v1509 = vadd.f32 0.0, %v1508
        %v1510 = vpop.f32.mrb[0].mxu0
        %1511 = vmatprep.mubr.f32.mxu0 0.0
        %1512 = vmatmul.mubr.f32.gmra.mrb[0].mxu0 %v1411
        %v1513 = vpop.f32.mrb[0].mxu0
        %v1514 = vadd.f32 0.0, %v1513
        %v1515 = vpop.f32.mrb[0].mxu0
        %1516 = vmatprep.mubr.f32.mxu0 0.0
        %1517 = vmatmul.mubr.f32.gmra.mrb[0].mxu0 %v1414
        %v1518 = vpop.f32.mrb[0].mxu0
        %v1519 = vadd.f32 0.0, %v1518
        %v1520 = vpop.f32.mrb[0].mxu0
        %1521 = vmatprep.mubr.f32.mxu0 0.0
        %1522 = vmatmul.mubr.f32.gmra.mrb[0].mxu0 %v1417
        %v1523 = vpop.f32.mrb[0].mxu0
        %v1524 = vadd.f32 0.0, %v1523
        %v1525 = vpop.f32.mrb[0].mxu0
        %1526 = vdwg.mxu0
        %v1527 = vadd.f32 %v1377, %v1489
        %v1528 = vadd.f32 %v1378, %v1494
        %v1529 = vadd.f32 %v1379, %v1499
        %v1530 = vadd.f32 %v1380, %v1504
        %v1531 = vadd.f32 %v1381, %v1509
        %v1532 = vadd.f32 %v1382, %v1514
        %v1533 = vadd.f32 %v1383, %v1519
        %v1534 = vadd.f32 %v1384, %v1524
        %s1535 = smul.u32 2, 1
        %s1536 = smul.u32 %s1535, 9
        %s1537 = smul.u32 %s1536, 1
        %s1538 = sshll.u32 %s1537, 4
        %1539 = dma.done [#allocation3], %s1538
        %v1540 = vld [vmem:[#allocation2] sm:$0xff]
        %s1541 = scalar_lea.vmem %s540, 16 [#allocation4]
        %v1542 = vld [vmem:[%s1541] sm:$0xff]
        %v1543 = vld [vmem:[%s1541 + $0x10] sm:$0xff]
        %v1544 = vld [vmem:[%s1541 + $0x20] sm:$0xff]
        %v1545 = vld [vmem:[%s1541 + $0x30] sm:$0xff]
        %v1546 = vld [vmem:[%s1541 + $0x40] sm:$0xff]
        %v1547 = vld [vmem:[%s1541 + $0x50] sm:$0xff]
        %v1548 = vld [vmem:[%s1541 + $0x60] sm:$0xff]
        %s1549 = scalar_lea.vmem %s2, 24
        %v1550 = vld [vmem:[%s1549] sm:$0xf]
        %v1552 = vsel %vm667, %v1542, 0
        %v1555 = vsel %vm667, %v1543, 0
        %v1558 = vsel %vm667, %v1544, 0
        %v1561 = vsel %vm667, %v1545, 0
        %v1564 = vsel %vm667, %v1546, 0
        %v1567 = vsel %vm667, %v1547, 0
        %v1570 = vsel %vm667, %v1548, 0
        %v1573 = vsel %vm667, %v1540, 0
        %v1576 = vsel %vm692, %v1550, 0
        %1578 = vmatprep.subr.mxu0 0.0
        %1579 = vmatpush1.msra.mxu0 %v1576
        %1580 = vmatprep.subr.mxu0 0.0
        %1581 = vmatpush1.msra.mxu0 0.0
        %1582 = vmatprep.subr.mxu0 0.0
        %1583 = vmatpush1.msra.mxu0 0.0
        %1584 = vmatprep.subr.mxu0 0.0
        %1585 = vmatpush1.msra.mxu0 0.0
        %1586 = vmatprep.subr.mxu0 0.0
        %1587 = vmatpush1.msra.mxu0 0.0
        %1588 = vmatprep.subr.mxu0 0.0
        %1589 = vmatpush1.msra.mxu0 0.0
        %1590 = vmatprep.subr.mxu0 0.0
        %1591 = vmatpush1.msra.mxu0 0.0
        %1592 = vmatprep.subr.mxu0 0.0
        %1593 = vmatpush1.msra.mxu0 0.0
        %1594 = vmatprep.subr.mxu0 0.0
        %1595 = vmatpush1.msra.mxu0 0.0
        %1596 = vmatprep.subr.mxu0 0.0
        %1597 = vmatpush1.msra.mxu0 0.0
        %1598 = vmatprep.subr.mxu0 0.0
        %1599 = vmatpush1.msra.mxu0 0.0
        %1600 = vmatprep.subr.mxu0 0.0
        %1601 = vmatpush1.msra.mxu0 0.0
        %1602 = vmatprep.subr.mxu0 0.0
        %1603 = vmatpush1.msra.mxu0 0.0
        %1604 = vmatprep.subr.mxu0 0.0
        %1605 = vmatpush1.msra.mxu0 0.0
        %1606 = vmatprep.subr.mxu0 0.0
        %1607 = vmatpush1.msra.mxu0 0.0
        %1608 = vmatprep.subr.mxu0 0.0
        %1609 = vmatpush1.msra.mxu0 0.0
        %1610 = vmatprep.subr.mxu0 0.0
        %1611 = vmatpush1.msra.mxu0 0.0
        %1612 = vmatprep.subr.mxu0 0.0
        %1613 = vmatpush1.msra.mxu0 0.0
        %1614 = vmatprep.subr.mxu0 0.0
        %1615 = vmatpush1.msra.mxu0 0.0
        %1616 = vmatprep.subr.mxu0 0.0
        %1617 = vmatpush1.msra.mxu0 0.0
        %1618 = vmatprep.subr.mxu0 0.0
        %1619 = vmatpush1.msra.mxu0 0.0
        %1620 = vmatprep.subr.mxu0 0.0
        %1621 = vmatpush1.msra.mxu0 0.0
        %1622 = vmatprep.subr.mxu0 0.0
        %1623 = vmatpush1.msra.mxu0 0.0
        %1624 = vmatprep.subr.mxu0 0.0
        %1625 = vmatpush1.msra.mxu0 0.0
        %1626 = vmatprep.subr.mxu0 0.0
        %1627 = vmatpush1.msra.mxu0 0.0
        %1628 = vmatprep.subr.mxu0 0.0
        %1629 = vmatpush1.msra.mxu0 0.0
        %1630 = vmatprep.subr.mxu0 0.0
        %1631 = vmatpush1.msra.mxu0 0.0
        %1632 = vmatprep.subr.mxu0 0.0
        %1633 = vmatpush1.msra.mxu0 0.0
        %1634 = vmatprep.subr.mxu0 0.0
        %1635 = vmatpush1.msra.mxu0 0.0
        %1636 = vmatprep.subr.mxu0 0.0
        %1637 = vmatpush1.msra.mxu0 0.0
        %1638 = vmatprep.subr.mxu0 0.0
        %1639 = vmatpush1.msra.mxu0 0.0
        %1640 = vmatprep.subr.mxu0 0.0
        %1641 = vmatpush1.msra.mxu0 0.0
        %1642 = vmatprep.mubr.f32.mxu0 0.0
        %1643 = vmatmul.mubr.f32.gmra.mrb[0].mxu0 %v1552
        %v1644 = vpop.f32.mrb[0].mxu0
        %v1645 = vadd.f32 0.0, %v1644
        %v1646 = vpop.f32.mrb[0].mxu0
        %1647 = vmatprep.mubr.f32.mxu0 0.0
        %1648 = vmatmul.mubr.f32.gmra.mrb[0].mxu0 %v1555
        %v1649 = vpop.f32.mrb[0].mxu0
        %v1650 = vadd.f32 0.0, %v1649
        %v1651 = vpop.f32.mrb[0].mxu0
        %1652 = vmatprep.mubr.f32.mxu0 0.0
        %1653 = vmatmul.mubr.f32.gmra.mrb[0].mxu0 %v1558
        %v1654 = vpop.f32.mrb[0].mxu0
        %v1655 = vadd.f32 0.0, %v1654
        %v1656 = vpop.f32.mrb[0].mxu0
        %1657 = vmatprep.mubr.f32.mxu0 0.0
        %1658 = vmatmul.mubr.f32.gmra.mrb[0].mxu0 %v1561
        %v1659 = vpop.f32.mrb[0].mxu0
        %v1660 = vadd.f32 0.0, %v1659
        %v1661 = vpop.f32.mrb[0].mxu0
        %1662 = vmatprep.mubr.f32.mxu0 0.0
        %1663 = vmatmul.mubr.f32.gmra.mrb[0].mxu0 %v1564
        %v1664 = vpop.f32.mrb[0].mxu0
        %v1665 = vadd.f32 0.0, %v1664
        %v1666 = vpop.f32.mrb[0].mxu0
        %1667 = vmatprep.mubr.f32.mxu0 0.0
        %1668 = vmatmul.mubr.f32.gmra.mrb[0].mxu0 %v1567
        %v1669 = vpop.f32.mrb[0].mxu0
        %v1670 = vadd.f32 0.0, %v1669
        %v1671 = vpop.f32.mrb[0].mxu0
        %1672 = vmatprep.mubr.f32.mxu0 0.0
        %1673 = vmatmul.mubr.f32.gmra.mrb[0].mxu0 %v1570
        %v1674 = vpop.f32.mrb[0].mxu0
        %v1675 = vadd.f32 0.0, %v1674
        %v1676 = vpop.f32.mrb[0].mxu0
        %1677 = vmatprep.mubr.f32.mxu0 0.0
        %1678 = vmatmul.mubr.f32.gmra.mrb[0].mxu0 %v1573
        %v1679 = vpop.f32.mrb[0].mxu0
        %v1680 = vadd.f32 0.0, %v1679
        %v1681 = vpop.f32.mrb[0].mxu0
        %1682 = vdwg.mxu0
        %v1683 = vadd.f32 %v1527, %v1645
        %v1684 = vadd.f32 %v1528, %v1650
        %v1685 = vadd.f32 %v1529, %v1655
        %v1686 = vadd.f32 %v1530, %v1660
        %v1687 = vadd.f32 %v1531, %v1665
        %v1688 = vadd.f32 %v1532, %v1670
        %v1689 = vadd.f32 %v1533, %v1675
        %v1690 = vadd.f32 %v1534, %v1680
        %s1691 = scalar_lea.vmem [#allocation2], 16
        %v1692 = vld [vmem:[%s1691] sm:$0xff]
        %s1693 = scalar_lea.vmem %s540, 144 [#allocation4]
        %v1694 = vld [vmem:[%s1693] sm:$0xff]
        %v1695 = vld [vmem:[%s1693 + $0x10] sm:$0xff]
        %v1696 = vld [vmem:[%s1693 + $0x20] sm:$0xff]
        %v1697 = vld [vmem:[%s1693 + $0x30] sm:$0xff]
        %v1698 = vld [vmem:[%s1693 + $0x40] sm:$0xff]
        %v1699 = vld [vmem:[%s1693 + $0x50] sm:$0xff]
        %v1700 = vld [vmem:[%s1693 + $0x60] sm:$0xff]
        %s1701 = scalar_lea.vmem %s2, 28
        %v1702 = vld [vmem:[%s1701] sm:$0xf]
        %v1704 = vsel %vm667, %v1694, 0
        %v1707 = vsel %vm667, %v1695, 0
        %v1710 = vsel %vm667, %v1696, 0
        %v1713 = vsel %vm667, %v1697, 0
        %v1716 = vsel %vm667, %v1698, 0
        %v1719 = vsel %vm667, %v1699, 0
        %v1722 = vsel %vm667, %v1700, 0
        %v1725 = vsel %vm667, %v1692, 0
        %v1728 = vsel %vm692, %v1702, 0
        %1730 = vmatprep.subr.mxu0 0.0
        %1731 = vmatpush1.msra.mxu0 %v1728
        %1732 = vmatprep.subr.mxu0 0.0
        %1733 = vmatpush1.msra.mxu0 0.0
        %1734 = vmatprep.subr.mxu0 0.0
        %1735 = vmatpush1.msra.mxu0 0.0
        %1736 = vmatprep.subr.mxu0 0.0
        %1737 = vmatpush1.msra.mxu0 0.0
        %1738 = vmatprep.subr.mxu0 0.0
        %1739 = vmatpush1.msra.mxu0 0.0
        %1740 = vmatprep.subr.mxu0 0.0
        %1741 = vmatpush1.msra.mxu0 0.0
        %1742 = vmatprep.subr.mxu0 0.0
        %1743 = vmatpush1.msra.mxu0 0.0
        %1744 = vmatprep.subr.mxu0 0.0
        %1745 = vmatpush1.msra.mxu0 0.0
        %1746 = vmatprep.subr.mxu0 0.0
        %1747 = vmatpush1.msra.mxu0 0.0
        %1748 = vmatprep.subr.mxu0 0.0
        %1749 = vmatpush1.msra.mxu0 0.0
        %1750 = vmatprep.subr.mxu0 0.0
        %1751 = vmatpush1.msra.mxu0 0.0
        %1752 = vmatprep.subr.mxu0 0.0
        %1753 = vmatpush1.msra.mxu0 0.0
        %1754 = vmatprep.subr.mxu0 0.0
        %1755 = vmatpush1.msra.mxu0 0.0
        %1756 = vmatprep.subr.mxu0 0.0
        %1757 = vmatpush1.msra.mxu0 0.0
        %1758 = vmatprep.subr.mxu0 0.0
        %1759 = vmatpush1.msra.mxu0 0.0
        %1760 = vmatprep.subr.mxu0 0.0
        %1761 = vmatpush1.msra.mxu0 0.0
        %1762 = vmatprep.subr.mxu0 0.0
        %1763 = vmatpush1.msra.mxu0 0.0
        %1764 = vmatprep.subr.mxu0 0.0
        %1765 = vmatpush1.msra.mxu0 0.0
        %1766 = vmatprep.subr.mxu0 0.0
        %1767 = vmatpush1.msra.mxu0 0.0
        %1768 = vmatprep.subr.mxu0 0.0
        %1769 = vmatpush1.msra.mxu0 0.0
        %1770 = vmatprep.subr.mxu0 0.0
        %1771 = vmatpush1.msra.mxu0 0.0
        %1772 = vmatprep.subr.mxu0 0.0
        %1773 = vmatpush1.msra.mxu0 0.0
        %1774 = vmatprep.subr.mxu0 0.0
        %1775 = vmatpush1.msra.mxu0 0.0
        %1776 = vmatprep.subr.mxu0 0.0
        %1777 = vmatpush1.msra.mxu0 0.0
        %1778 = vmatprep.subr.mxu0 0.0
        %1779 = vmatpush1.msra.mxu0 0.0
        %1780 = vmatprep.subr.mxu0 0.0
        %1781 = vmatpush1.msra.mxu0 0.0
        %1782 = vmatprep.subr.mxu0 0.0
        %1783 = vmatpush1.msra.mxu0 0.0
        %1784 = vmatprep.subr.mxu0 0.0
        %1785 = vmatpush1.msra.mxu0 0.0
        %1786 = vmatprep.subr.mxu0 0.0
        %1787 = vmatpush1.msra.mxu0 0.0
        %1788 = vmatprep.subr.mxu0 0.0
        %1789 = vmatpush1.msra.mxu0 0.0
        %1790 = vmatprep.subr.mxu0 0.0
        %1791 = vmatpush1.msra.mxu0 0.0
        %1792 = vmatprep.subr.mxu0 0.0
        %1793 = vmatpush1.msra.mxu0 0.0
        %1794 = vmatprep.mubr.f32.mxu0 0.0
        %1795 = vmatmul.mubr.f32.gmra.mrb[0].mxu0 %v1704
        %v1796 = vpop.f32.mrb[0].mxu0
        %v1797 = vadd.f32 0.0, %v1796
        %v1798 = vpop.f32.mrb[0].mxu0
        %1799 = vmatprep.mubr.f32.mxu0 0.0
        %1800 = vmatmul.mubr.f32.gmra.mrb[0].mxu0 %v1707
        %v1801 = vpop.f32.mrb[0].mxu0
        %v1802 = vadd.f32 0.0, %v1801
        %v1803 = vpop.f32.mrb[0].mxu0
        %1804 = vmatprep.mubr.f32.mxu0 0.0
        %1805 = vmatmul.mubr.f32.gmra.mrb[0].mxu0 %v1710
        %v1806 = vpop.f32.mrb[0].mxu0
        %v1807 = vadd.f32 0.0, %v1806
        %v1808 = vpop.f32.mrb[0].mxu0
        %1809 = vmatprep.mubr.f32.mxu0 0.0
        %1810 = vmatmul.mubr.f32.gmra.mrb[0].mxu0 %v1713
        %v1811 = vpop.f32.mrb[0].mxu0
        %v1812 = vadd.f32 0.0, %v1811
        %v1813 = vpop.f32.mrb[0].mxu0
        %1814 = vmatprep.mubr.f32.mxu0 0.0
        %1815 = vmatmul.mubr.f32.gmra.mrb[0].mxu0 %v1716
        %v1816 = vpop.f32.mrb[0].mxu0
        %v1817 = vadd.f32 0.0, %v1816
        %v1818 = vpop.f32.mrb[0].mxu0
        %1819 = vmatprep.mubr.f32.mxu0 0.0
        %1820 = vmatmul.mubr.f32.gmra.mrb[0].mxu0 %v1719
        %v1821 = vpop.f32.mrb[0].mxu0
        %v1822 = vadd.f32 0.0, %v1821
        %v1823 = vpop.f32.mrb[0].mxu0
        %1824 = vmatprep.mubr.f32.mxu0 0.0
        %1825 = vmatmul.mubr.f32.gmra.mrb[0].mxu0 %v1722
        %v1826 = vpop.f32.mrb[0].mxu0
        %v1827 = vadd.f32 0.0, %v1826
        %v1828 = vpop.f32.mrb[0].mxu0
        %1829 = vmatprep.mubr.f32.mxu0 0.0
        %1830 = vmatmul.mubr.f32.gmra.mrb[0].mxu0 %v1725
        %v1831 = vpop.f32.mrb[0].mxu0
        %v1832 = vadd.f32 0.0, %v1831
        %v1833 = vpop.f32.mrb[0].mxu0
        %1834 = vdwg.mxu0
        %v1835 = vadd.f32 %v1683, %v1797
        %v1836 = vadd.f32 %v1684, %v1802
        %v1837 = vadd.f32 %v1685, %v1807
        %v1838 = vadd.f32 %v1686, %v1812
        %v1839 = vadd.f32 %v1687, %v1817
        %v1840 = vadd.f32 %v1688, %v1822
        %v1841 = vadd.f32 %v1689, %v1827
        %v1842 = vadd.f32 %v1690, %v1832
        %v1843 = vld [vmem:[#allocation2 + $0x1] sm:$0xff]
        %v1844 = vld [vmem:[%s1541 + $0x1] sm:$0xff]
        %v1845 = vld [vmem:[%s1541 + $0x11] sm:$0xff]
        %v1846 = vld [vmem:[%s1541 + $0x21] sm:$0xff]
        %v1847 = vld [vmem:[%s1541 + $0x31] sm:$0xff]
        %v1848 = vld [vmem:[%s1541 + $0x41] sm:$0xff]
        %v1849 = vld [vmem:[%s1541 + $0x51] sm:$0xff]
        %v1850 = vld [vmem:[%s1541 + $0x61] sm:$0xff]
        %s1851 = scalar_lea.vmem %s2, 32
        %v1852 = vld [vmem:[%s1851] sm:$0xf]
        %v1854 = vsel %vm667, %v1844, 0
        %v1857 = vsel %vm667, %v1845, 0
        %v1860 = vsel %vm667, %v1846, 0
        %v1863 = vsel %vm667, %v1847, 0
        %v1866 = vsel %vm667, %v1848, 0
        %v1869 = vsel %vm667, %v1849, 0
        %v1872 = vsel %vm667, %v1850, 0
        %v1875 = vsel %vm667, %v1843, 0
        %v1878 = vsel %vm692, %v1852, 0
        %1880 = vmatprep.subr.mxu0 0.0
        %1881 = vmatpush1.msra.mxu0 %v1878
        %1882 = vmatprep.subr.mxu0 0.0
        %1883 = vmatpush1.msra.mxu0 0.0
        %1884 = vmatprep.subr.mxu0 0.0
        %1885 = vmatpush1.msra.mxu0 0.0
        %1886 = vmatprep.subr.mxu0 0.0
        %1887 = vmatpush1.msra.mxu0 0.0
        %1888 = vmatprep.subr.mxu0 0.0
        %1889 = vmatpush1.msra.mxu0 0.0
        %1890 = vmatprep.subr.mxu0 0.0
        %1891 = vmatpush1.msra.mxu0 0.0
        %1892 = vmatprep.subr.mxu0 0.0
        %1893 = vmatpush1.msra.mxu0 0.0
        %1894 = vmatprep.subr.mxu0 0.0
        %1895 = vmatpush1.msra.mxu0 0.0
        %1896 = vmatprep.subr.mxu0 0.0
        %1897 = vmatpush1.msra.mxu0 0.0
        %1898 = vmatprep.subr.mxu0 0.0
        %1899 = vmatpush1.msra.mxu0 0.0
        %1900 = vmatprep.subr.mxu0 0.0
        %1901 = vmatpush1.msra.mxu0 0.0
        %1902 = vmatprep.subr.mxu0 0.0
        %1903 = vmatpush1.msra.mxu0 0.0
        %1904 = vmatprep.subr.mxu0 0.0
        %1905 = vmatpush1.msra.mxu0 0.0
        %1906 = vmatprep.subr.mxu0 0.0
        %1907 = vmatpush1.msra.mxu0 0.0
        %1908 = vmatprep.subr.mxu0 0.0
        %1909 = vmatpush1.msra.mxu0 0.0
        %1910 = vmatprep.subr.mxu0 0.0
        %1911 = vmatpush1.msra.mxu0 0.0
        %1912 = vmatprep.subr.mxu0 0.0
        %1913 = vmatpush1.msra.mxu0 0.0
        %1914 = vmatprep.subr.mxu0 0.0
        %1915 = vmatpush1.msra.mxu0 0.0
        %1916 = vmatprep.subr.mxu0 0.0
        %1917 = vmatpush1.msra.mxu0 0.0
        %1918 = vmatprep.subr.mxu0 0.0
        %1919 = vmatpush1.msra.mxu0 0.0
        %1920 = vmatprep.subr.mxu0 0.0
        %1921 = vmatpush1.msra.mxu0 0.0
        %1922 = vmatprep.subr.mxu0 0.0
        %1923 = vmatpush1.msra.mxu0 0.0
        %1924 = vmatprep.subr.mxu0 0.0
        %1925 = vmatpush1.msra.mxu0 0.0
        %1926 = vmatprep.subr.mxu0 0.0
        %1927 = vmatpush1.msra.mxu0 0.0
        %1928 = vmatprep.subr.mxu0 0.0
        %1929 = vmatpush1.msra.mxu0 0.0
        %1930 = vmatprep.subr.mxu0 0.0
        %1931 = vmatpush1.msra.mxu0 0.0
        %1932 = vmatprep.subr.mxu0 0.0
        %1933 = vmatpush1.msra.mxu0 0.0
        %1934 = vmatprep.subr.mxu0 0.0
        %1935 = vmatpush1.msra.mxu0 0.0
        %1936 = vmatprep.subr.mxu0 0.0
        %1937 = vmatpush1.msra.mxu0 0.0
        %1938 = vmatprep.subr.mxu0 0.0
        %1939 = vmatpush1.msra.mxu0 0.0
        %1940 = vmatprep.subr.mxu0 0.0
        %1941 = vmatpush1.msra.mxu0 0.0
        %1942 = vmatprep.subr.mxu0 0.0
        %1943 = vmatpush1.msra.mxu0 0.0
        %1944 = vmatprep.mubr.f32.mxu0 0.0
        %1945 = vmatmul.mubr.f32.gmra.mrb[0].mxu0 %v1854
        %v1946 = vpop.f32.mrb[0].mxu0
        %v1947 = vadd.f32 0.0, %v1946
        %v1948 = vpop.f32.mrb[0].mxu0
        %1949 = vmatprep.mubr.f32.mxu0 0.0
        %1950 = vmatmul.mubr.f32.gmra.mrb[0].mxu0 %v1857
        %v1951 = vpop.f32.mrb[0].mxu0
        %v1952 = vadd.f32 0.0, %v1951
        %v1953 = vpop.f32.mrb[0].mxu0
        %1954 = vmatprep.mubr.f32.mxu0 0.0
        %1955 = vmatmul.mubr.f32.gmra.mrb[0].mxu0 %v1860
        %v1956 = vpop.f32.mrb[0].mxu0
        %v1957 = vadd.f32 0.0, %v1956
        %v1958 = vpop.f32.mrb[0].mxu0
        %1959 = vmatprep.mubr.f32.mxu0 0.0
        %1960 = vmatmul.mubr.f32.gmra.mrb[0].mxu0 %v1863
        %v1961 = vpop.f32.mrb[0].mxu0
        %v1962 = vadd.f32 0.0, %v1961
        %v1963 = vpop.f32.mrb[0].mxu0
        %1964 = vmatprep.mubr.f32.mxu0 0.0
        %1965 = vmatmul.mubr.f32.gmra.mrb[0].mxu0 %v1866
        %v1966 = vpop.f32.mrb[0].mxu0
        %v1967 = vadd.f32 0.0, %v1966
        %v1968 = vpop.f32.mrb[0].mxu0
        %1969 = vmatprep.mubr.f32.mxu0 0.0
        %1970 = vmatmul.mubr.f32.gmra.mrb[0].mxu0 %v1869
        %v1971 = vpop.f32.mrb[0].mxu0
        %v1972 = vadd.f32 0.0, %v1971
        %v1973 = vpop.f32.mrb[0].mxu0
        %1974 = vmatprep.mubr.f32.mxu0 0.0
        %1975 = vmatmul.mubr.f32.gmra.mrb[0].mxu0 %v1872
        %v1976 = vpop.f32.mrb[0].mxu0
        %v1977 = vadd.f32 0.0, %v1976
        %v1978 = vpop.f32.mrb[0].mxu0
        %1979 = vmatprep.mubr.f32.mxu0 0.0
        %1980 = vmatmul.mubr.f32.gmra.mrb[0].mxu0 %v1875
        %v1981 = vpop.f32.mrb[0].mxu0
        %v1982 = vadd.f32 0.0, %v1981
        %v1983 = vpop.f32.mrb[0].mxu0
        %1984 = vdwg.mxu0
        %v1985 = vadd.f32 %v1835, %v1947
        %v1986 = vadd.f32 %v1836, %v1952
        %v1987 = vadd.f32 %v1837, %v1957
        %v1988 = vadd.f32 %v1838, %v1962
        %v1989 = vadd.f32 %v1839, %v1967
        %v1990 = vadd.f32 %v1840, %v1972
        %v1991 = vadd.f32 %v1841, %v1977
        %v1992 = vadd.f32 %v1842, %v1982
        %v1993 = vld [vmem:[%s3] sm:$0x1]
        %v1995 = vlaneseq
        %v1996 = vshrl.u32 %v1995, 7
        %v1997 = vsub.s32 0, %v1996
        %v1998 = vrot.slane %v1993, %v1997
        %v2000 = vadd.f32 %v1985, %v1998
        %v2001 = vadd.f32 %v1986, %v1998
        %v2002 = vadd.f32 %v1987, %v1998
        %v2003 = vadd.f32 %v1988, %v1998
        %v2004 = vadd.f32 %v1989, %v1998
        %v2005 = vadd.f32 %v1990, %v1998
        %v2006 = vadd.f32 %v1991, %v1998
        %v2007 = vadd.f32 %v1992, %v1998
        %2008 = vst [vmem:[%s579] sm:$0xff] %v2000
        %2009 = vst [vmem:[%s579 + $0x8] sm:$0xff] %v2001
        %2010 = vst [vmem:[%s579 + $0x10] sm:$0xff] %v2002
        %2011 = vst [vmem:[%s579 + $0x18] sm:$0xff] %v2003
        %2012 = vst [vmem:[%s579 + $0x20] sm:$0xff] %v2004
        %2013 = vst [vmem:[%s579 + $0x28] sm:$0xff] %v2005
        %2014 = vst [vmem:[%s579 + $0x30] sm:$0xff] %v2006
        %2015 = vst [vmem:[%s579 + $0x38] sm:$0xff] %v2007
        %s2016 = smul.u32 8, %s20
        %p2017 = scmp.lt.s32.totalorder %s19, 1
        %s2018 = scalar_select %p2017, %s19, 1
        %p2019 = scmp.lt.s32.totalorder %s2016, 7
        %s2020 = scalar_select %p2019, %s2016, 7
        %s2021 = smul.addr %s2018, 8
        %s2022 = sadd.s32 %s2020, %s2021
        %s2023 = smul.addr %s2022, 8
        %s2024 = scalar_lea.vmem %s4, %s2023
        // Predicated region
        $region122: #{downsample.1} parent=79 // pred_check
          %p2025 = pneg %p117
        $region123: #{downsample.1} parent=79 // pred_check_branch
          %2027 = sbr.rel (%p2025) target = $region125
        $region124: #{downsample.1} parent=79 // pred_region
          %s2028 = smul.u32 8, %s20
        $region125: #{downsample.1} parent=79 // pred_fallthru
          _
      $region80: #{downsample.1} parent=5 // pred_fallthru
        _
      %p2029 = scmp.le.s32.totalorder 2, %s10
      // Predicated region
      $region126: #{downsample.1} parent=5 // pred_check
        %p2030 = pneg %p2029
      $region127: #{downsample.1} parent=5 // pred_check_branch
        %2032 = sbr.rel (%p2030) target = $region129
      $region128: #{downsample.1} parent=5 // pred_region
        %s2033 = ssub.s32 %s10, 2
        // Predicated region
        $region130: #{downsample.1} parent=128 // pred_check
          %p2034 = pneg %p123
        $region131: #{downsample.1} parent=128 // pred_check_branch
          %2036 = sbr.rel (%p2034) target = $region133
        $region132: #{downsample.1} parent=128 // pred_region
          %s2037 = smul.u32 8, %s22
          %p2038 = scmp.lt.s32.totalorder %s21, 1
          %s2039 = scalar_select %p2038, %s21, 1
          %p2040 = scmp.lt.s32.totalorder %s2037, 7
          %s2041 = scalar_select %p2040, %s2037, 7
          %s2042 = smul.addr %s2039, 8
          %s2043 = sadd.s32 %s2041, %s2042
          %s2044 = smul.addr %s2043, 8
          %s2045 = scalar_lea.vmem %s4, %s2044
        $region133: #{downsample.1} parent=128 // pred_fallthru
          _
      $region129: #{downsample.1} parent=5 // pred_fallthru
        _
    $region6: #{downsample.1} parent=1 // loop_footer
      %s14 = sadd.s32 1, %s10
    $region7: #{downsample.1} parent=1 // loop_footer_branch
      %9 = sbr.rel target = $region3
    $region8: #{downsample.1} parent=1 // loop_exit
      _
  %2046 = vsyncmov [#allocation3]
  %s2047 = vpop.sfrf %2046
  %p2048 = scmp.eq.s32.totalorder %s2047, 0
  %p2049 = pneg %p2048
  %2051 = shalt.err (%p2049)

</llo_original>
